<compile_context>
chip_gen: v6e
topology: v6e:2x2x1
jax: 0.10.0
libtpu: 0.0.40
codegen_flags: <defaults>
</compile_context>

<pallas_src>
import jax
import jax.numpy as jnp
from jax.experimental import pallas as pl
from jax.experimental.pallas import tpu as pltpu


def _round_up(x, m):
    return (x + m - 1) // m * m


def _device_kind():
    try:
        return jax.devices()[0].device_kind.lower()
    except Exception:
        return ""


def _auto_a_dtype(counts, is_v7):
    """int8 counts on v5e/v6e when exact (<=127); bf16 otherwise (exact <=256)."""
    if is_v7:
        return jnp.bfloat16  # v7x: keep bf16 (no MXU int path); HBM still OK at 3.2 TB/s
    try:
        max_count = int(jax.device_get(jnp.max(counts)))
    except Exception:  # traced under jit -> cannot inspect concretely
        return jnp.bfloat16
    return jnp.int8 if max_count <= 127 else jnp.bfloat16


def _to_bf16(a):
    """Dequant helper: int8 edge counts -> bf16 via f32 (exact for counts <= 127)."""
    if a.dtype == jnp.bfloat16:
        return a
    return a.astype(jnp.float32).astype(jnp.bfloat16)


# ---------------------------------------------------------------------------
# Kernel A: layer-1 SAGEConv + ReLU, plus BOTH layer-2 pre-projections.
#   agg = (sum_k A_counts[i,k] @ x[k]) * inv_deg[i]
#   h   = relu( agg @ W1_neigh + x_i @ W1_self + b1 )
#   p2  = h @ W2_neigh              (bf16, feeds layer-2 aggregation)
#   s2  = h @ W2_self + b2          (f32, layer-2 self term, added verbatim in kernel B)
# grid = (row blocks, source-node reduction blocks); reduction axis last.
# ---------------------------------------------------------------------------
def _make_layer1_kernel(tk, x_resident):
    def kernel(a_ref, x_nbr_ref, x_self_ref, invdeg_ref,
               w1n_ref, w1s_ref, b1_ref, w2n_ref, w2s_ref, b2_ref,
               p2_ref, s2_ref, acc_ref):
        k = pl.program_id(1)

        @pl.when(k == 0)
        def _():
            acc_ref[...] = jnp.zeros_like(acc_ref)

        a = _to_bf16(a_ref[...])
        if x_resident:
            # x is fully VMEM-resident (constant-index block); slice the k-panel.
            xk = x_nbr_ref[pl.ds(pl.multiple_of(k * tk, tk), tk), :]
        else:
            xk = x_nbr_ref[...]
        acc_ref[...] += jnp.dot(a, xk, preferred_element_type=jnp.float32)

        @pl.when(k == pl.num_programs(1) - 1)
        def _():
            agg = (acc_ref[...] * invdeg_ref[...]).astype(jnp.bfloat16)
            z = (jnp.dot(agg, w1n_ref[...], preferred_element_type=jnp.float32)
                 + jnp.dot(x_self_ref[...], w1s_ref[...],
                           preferred_element_type=jnp.float32)
                 + b1_ref[...])
            h = jnp.maximum(z, 0.0).astype(jnp.bfloat16)   # f32 ReLU, bf16 storage
            p2_ref[...] = jnp.dot(h, w2n_ref[...],
                                  preferred_element_type=jnp.float32
                                  ).astype(p2_ref.dtype)
            s2_ref[...] = (jnp.dot(h, w2s_ref[...],
                                   preferred_element_type=jnp.float32)
                           + b2_ref[...]).astype(s2_ref.dtype)
    return kernel


# ---------------------------------------------------------------------------
# Kernel B: layer-2 aggregation only.
#   out = (sum_k A_counts[i,k] @ p2[k]) * inv_deg[i] + s2[i]
# ---------------------------------------------------------------------------
def _make_layer2_kernel(tk, p2_resident):
    def kernel(a_ref, p_nbr_ref, invdeg_ref, s2_ref, out_ref, acc_ref):
        k = pl.program_id(1)

        @pl.when(k == 0)
        def _():
            acc_ref[...] = jnp.zeros_like(acc_ref)

        a = _to_bf16(a_ref[...])
        if p2_resident:
            pk = p_nbr_ref[pl.ds(pl.multiple_of(k * tk, tk), tk), :]
        else:
            pk = p_nbr_ref[...]
        acc_ref[...] += jnp.dot(a, pk, preferred_element_type=jnp.float32)

        @pl.when(k == pl.num_programs(1) - 1)
        def _():
            out_ref[...] = (acc_ref[...] * invdeg_ref[...]
                            + s2_ref[...]).astype(out_ref.dtype)
    return kernel


# ---------------------------------------------------------------------------
# Glue (plain JAX): exact integer edge counts + f32 per-row inverse degree.
# Duplicate edges are counted (multiset mean); isolated nodes aggregate to 0.
# ---------------------------------------------------------------------------
def build_adjacency_counts(edge_index, num_nodes):
    src, dst = edge_index[0], edge_index[1]
    counts = jnp.zeros((num_nodes, num_nodes), jnp.float32)
    counts = counts.at[dst, src].add(1.0)               # counts[i, j] = #edges j -> i
    deg = jnp.sum(counts, axis=1, keepdims=True)
    inv_deg = 1.0 / jnp.maximum(deg, 1.0)
    return counts, inv_deg


def gsage_forward(x, edge_index, params, *, tm=None, tk=None, a_dtype=None):
    n, f = x.shape
    h_dim = params["w1_self"].shape[1]
    c = params["w2_self"].shape[1]

    fp = _round_up(f, 128)
    hp = _round_up(h_dim, 128)
    cp = _round_up(c, 128)
    np_ = _round_up(n, 128)

    kind = _device_kind()
    is_v7 = "v7" in kind
    vmem_limit = (40 if is_v7 else 64) * 1024 * 1024     # per-generation budget

    counts, inv_deg = build_adjacency_counts(edge_index, n)
    if a_dtype is None:
        a_dtype = _auto_a_dtype(counts, is_v7)
    a_bytes = jnp.dtype(a_dtype).itemsize

    # ---- tile selection -----------------------------------------------------
    if tm is None:
        tm = 512
        while tm > 128 and (np_ % tm != 0 or np_ // tm < 2):
            tm //= 2                                     # keep gi >= 2 (megacore)
    tm = min(tm, np_)
    assert np_ % tm == 0, "tm must divide the padded node count"

    if tk is None:
        if 2 * tm * np_ * a_bytes <= vmem_limit // 4:    # full A row panel fits
            tk = np_                                     # collapse the reduction
        else:
            tk = 512
            while tk > 128 and np_ % tk != 0:
                tk //= 2
    assert np_ % tk == 0, "tk must divide the padded node count"
    gi, gk = np_ // tm, np_ // tk

    x_resident = (gk > 1) and (np_ * fp * 2 <= vmem_limit // 6)
    p2_resident = (gk > 1) and (np_ * cp * 2 <= vmem_limit // 6)

    # ---- pad operands (lane-dense, MXU-friendly) -----------------------------
    def pad2(m, rows, cols, dtype):
        m = m.astype(dtype)
        return jnp.pad(m, ((0, rows - m.shape[0]), (0, cols - m.shape[1])))

    a_pad = pad2(counts, np_, np_, a_dtype)              # exact integer counts
    x_pad = pad2(x, np_, fp, jnp.bfloat16)
    invdeg_pad = pad2(inv_deg, np_, 1, jnp.float32)
    w1n = pad2(params["w1_neigh"], fp, hp, jnp.bfloat16)
    w1s = pad2(params["w1_self"], fp, hp, jnp.bfloat16)
    w2n = pad2(params["w2_neigh"], hp, cp, jnp.bfloat16)
    w2s = pad2(params["w2_self"], hp, cp, jnp.bfloat16)
    b1 = pad2(params["b1"], 1, hp, jnp.float32)
    b2 = pad2(params["b2"], 1, cp, jnp.float32)

    compiler_params = pltpu.CompilerParams(
        dimension_semantics=("parallel", "arbitrary"),
        vmem_limit_bytes=vmem_limit,
    )

    # ---- layer 1 (+ both layer-2 pre-projections) ----------------------------
    x_stream = np_ * fp * 2 * (1 if (x_resident or gk == 1) else gi)
    l1_cost = pl.CostEstimate(
        flops=2 * np_ * np_ * fp + 4 * np_ * fp * hp + 4 * np_ * hp * cp,
        transcendentals=0,
        bytes_accessed=int(np_ * np_ * a_bytes + x_stream + np_ * fp * 2
                           + 4 * fp * hp + 4 * hp * cp
                           + np_ * cp * 6 + np_ * 4),
    )
    x_nbr_spec = (pl.BlockSpec((np_, fp), lambda i, k: (0, 0)) if x_resident
                  else pl.BlockSpec((tk, fp), lambda i, k: (k, 0)))

    p2_pad, s2_pad = pl.pallas_call(
        _make_layer1_kernel(tk, x_resident),
        out_shape=(jax.ShapeDtypeStruct((np_, cp), jnp.bfloat16),
                   jax.ShapeDtypeStruct((np_, cp), jnp.float32)),
        grid_spec=pltpu.PrefetchScalarGridSpec(
            num_scalar_prefetch=0,
            grid=(gi, gk),
            in_specs=[
                pl.BlockSpec((tm, tk), lambda i, k: (i, k)),      # A counts
                x_nbr_spec,                                       # x (neighbor rows)
                pl.BlockSpec((tm, fp), lambda i, k: (i, 0)),      # x (self rows)
                pl.BlockSpec((tm, 1), lambda i, k: (i, 0)),       # inv_deg (f32)
                pl.BlockSpec((fp, hp), lambda i, k: (0, 0)),      # W1_neigh
                pl.BlockSpec((fp, hp), lambda i, k: (0, 0)),      # W1_self
                pl.BlockSpec((1, hp), lambda i, k: (0, 0)),       # b1
                pl.BlockSpec((hp, cp), lambda i, k: (0, 0)),      # W2_neigh
                pl.BlockSpec((hp, cp), lambda i, k: (0, 0)),      # W2_self
                pl.BlockSpec((1, cp), lambda i, k: (0, 0)),       # b2
            ],
            out_specs=[
                pl.BlockSpec((tm, cp), lambda i, k: (i, 0)),      # p2 = h @ W2_neigh
                pl.BlockSpec((tm, cp), lambda i, k: (i, 0)),      # s2 = h @ W2_self + b2
            ],
            scratch_shapes=[pltpu.VMEM((tm, fp), jnp.float32)],
        ),
        compiler_params=compiler_params,
        cost_estimate=l1_cost,
    )(a_pad, x_pad, x_pad, invdeg_pad, w1n, w1s, b1, w2n, w2s, b2)

    # ---- layer 2: aggregation only -------------------------------------------
    p2_stream = np_ * cp * 2 * (1 if (p2_resident or gk == 1) else gi)
    l2_cost = pl.CostEstimate(
        flops=2 * np_ * np_ * cp,
        transcendentals=0,
        bytes_accessed=int(np_ * np_ * a_bytes + p2_stream + np_ * cp * 8 + np_ * 4),
    )
    p2_nbr_spec = (pl.BlockSpec((np_, cp), lambda i, k: (0, 0)) if p2_resident
                   else pl.BlockSpec((tk, cp), lambda i, k: (k, 0)))

    out_pad = pl.pallas_call(
        _make_layer2_kernel(tk, p2_resident),
        out_shape=jax.ShapeDtypeStruct((np_, cp), jnp.float32),
        grid_spec=pltpu.PrefetchScalarGridSpec(
            num_scalar_prefetch=0,
            grid=(gi, gk),
            in_specs=[
                pl.BlockSpec((tm, tk), lambda i, k: (i, k)),      # A counts
                p2_nbr_spec,                                      # p2 (neighbor rows)
                pl.BlockSpec((tm, 1), lambda i, k: (i, 0)),       # inv_deg
                pl.BlockSpec((tm, cp), lambda i, k: (i, 0)),      # s2 (self term)
            ],
            out_specs=pl.BlockSpec((tm, cp), lambda i, k: (i, 0)),
            scratch_shapes=[pltpu.VMEM((tm, cp), jnp.float32)],
        ),
        compiler_params=compiler_params,
        cost_estimate=l2_cost,
    )(a_pad, p2_pad, invdeg_pad, s2_pad)

    # Unpad outside the kernel (kernel stores stay lane-dense at Cp multiple of 128).
    return out_pad[:n, :c]


# ---------------------------------------------------------------------------
# References
# ---------------------------------------------------------------------------
def gsage_reference_f32(x, edge_index, params):
    """Pure-f32 reference mirroring PyG SAGEConv mean semantics."""
    counts, inv_deg = build_adjacency_counts(edge_index, x.shape[0])
    a = counts * inv_deg
    h = jnp.maximum(a @ x @ params["w1_neigh"] + x @ params["w1_self"] + params["b1"], 0.0)
    return a @ h @ params["w2_neigh"] + h @ params["w2_self"] + params["b2"]


def gsage_reference_bf16(x, edge_index, params):
    """Reference mirroring the kernel numerics (bf16 operands, f32 accumulation,
    exact integer counts with f32 inv_deg applied after accumulation)."""
    counts, inv_deg = build_adjacency_counts(edge_index, x.shape[0])
    bf = lambda v: v.astype(jnp.bfloat16)
    f32 = jnp.float32
    a = bf(counts)                       # small-integer counts are exact in bf16
    xb = bf(x)
    agg = (jnp.dot(a, xb, preferred_element_type=f32) * inv_deg).astype(jnp.bfloat16)
    z = (jnp.dot(agg, bf(params["w1_neigh"]), preferred_element_type=f32)
         + jnp.dot(xb, bf(params["w1_self"]), preferred_element_type=f32)
         + params["b1"])
    hb = jnp.maximum(z, 0.0).astype(jnp.bfloat16)
    p2 = jnp.dot(hb, bf(params["w2_neigh"]), preferred_element_type=f32).astype(jnp.bfloat16)
    s2 = jnp.dot(hb, bf(params["w2_self"]), preferred_element_type=f32) + params["b2"]
    return jnp.dot(a, p2, preferred_element_type=f32) * inv_deg + s2


def init_params(key, num_features, hidden_dim, num_classes):
    ks = jax.random.split(key, 6)
    s1 = 1.0 / jnp.sqrt(num_features)
    s2 = 1.0 / jnp.sqrt(hidden_dim)
    return {
        "w1_self":  jax.random.uniform(ks[0], (num_features, hidden_dim), jnp.float32, -s1, s1),
        "w1_neigh": jax.random.uniform(ks[1], (num_features, hidden_dim), jnp.float32, -s1, s1),
        "b1":       jax.random.uniform(ks[2], (1, hidden_dim), jnp.float32, -s1, s1),
        "w2_self":  jax.random.uniform(ks[3], (hidden_dim, num_classes), jnp.float32, -s2, s2),
        "w2_neigh": jax.random.uniform(ks[4], (hidden_dim, num_classes), jnp.float32, -s2, s2),
        "b2":       jax.random.uniform(ks[5], (1, num_classes), jnp.float32, -s2, s2),
    }


if __name__ == "__main__":
    # Small graph, big enough to exercise a real row-block grid.
    num_nodes, num_features, hidden_dim, num_classes, num_edges = 256, 16, 32, 8, 512

    key = jax.random.PRNGKey(0)
    k_x, k_e, k_p = jax.random.split(key, 3)

    x = jax.random.normal(k_x, (num_nodes, num_features), jnp.float32)
    edge_index = jax.random.randint(k_e, (2, num_edges), 0, num_nodes, jnp.int32)
    params = init_params(k_p, num_features, hidden_dim, num_classes)

    ref_bf = gsage_reference_bf16(x, edge_index, params)
    ref_f32 = gsage_reference_f32(x, edge_index, params)

    # Default config: auto tiles (collapsed reduction for this small graph).
    out = jax.block_until_ready(gsage_forward(x, edge_index, params))
    assert out.shape == (num_nodes, num_classes)
    assert jnp.allclose(out, ref_bf, atol=1e-2, rtol=1e-2)
    assert jnp.allclose(out, ref_f32, atol=4e-2, rtol=4e-2)

    # Also exercise the multi-block reduction path with VMEM-resident x / p2.
    out2 = jax.block_until_ready(gsage_forward(x, edge_index, params, tm=128, tk=128))
    assert jnp.allclose(out2, ref_bf, atol=1e-2, rtol=1e-2)

    print("KERNEL_OK")
</pallas_src>

<mosaic_0001>
module attributes {stable_mosaic.version = 11 : i64} {
  func.func @kernel(%arg0: i32, %arg1: i32, %arg2: memref<128x256xi8, #tpu.memory_space<vmem>>, %arg3: memref<256x128xbf16, #tpu.memory_space<vmem>>, %arg4: memref<128x128xbf16, #tpu.memory_space<vmem>>, %arg5: memref<128x1xf32, #tpu.memory_space<vmem>>, %arg6: memref<128x128xbf16, #tpu.memory_space<vmem>>, %arg7: memref<128x128xbf16, #tpu.memory_space<vmem>>, %arg8: memref<1x128xf32, #tpu.memory_space<vmem>>, %arg9: memref<128x128xbf16, #tpu.memory_space<vmem>>, %arg10: memref<128x128xbf16, #tpu.memory_space<vmem>>, %arg11: memref<1x128xf32, #tpu.memory_space<vmem>>, %arg12: memref<128x128xbf16, #tpu.memory_space<vmem>>, %arg13: memref<128x128xf32, #tpu.memory_space<vmem>>, %arg14: memref<128x128xf32, #tpu.memory_space<vmem>>) attributes {dimension_semantics = [#tpu.dimension_semantics<parallel>, #tpu.dimension_semantics<arbitrary>], iteration_bounds = array<i64: 2, 1>, scalar_prefetch = 0 : i64, scratch_operands = 1 : i64, tpu.core_type = #tpu.core_type<tc>, window_params = [{transform_indices = @transform_0, window_bounds = array<i64: 128, 256>}, {transform_indices = @transform_1, window_bounds = array<i64: 256, 128>}, {transform_indices = @transform_2, window_bounds = array<i64: 128, 128>}, {transform_indices = @transform_3, window_bounds = array<i64: 128, 1>}, {pipeline_mode = #tpu.pipeline_mode<synchronous>, transform_indices = @transform_4, window_bounds = array<i64: 128, 128>}, {pipeline_mode = #tpu.pipeline_mode<synchronous>, transform_indices = @transform_5, window_bounds = array<i64: 128, 128>}, {pipeline_mode = #tpu.pipeline_mode<synchronous>, transform_indices = @transform_6, window_bounds = array<i64: 1, 128>}, {pipeline_mode = #tpu.pipeline_mode<synchronous>, transform_indices = @transform_7, window_bounds = array<i64: 128, 128>}, {pipeline_mode = #tpu.pipeline_mode<synchronous>, transform_indices = @transform_8, window_bounds = array<i64: 128, 128>}, {pipeline_mode = #tpu.pipeline_mode<synchronous>, transform_indices = @transform_9, window_bounds = array<i64: 1, 128>}, {transform_indices = @transform_10, window_bounds = array<i64: 128, 128>}, {transform_indices = @transform_11, window_bounds = array<i64: 128, 128>}]} {
    %c0_i32 = arith.constant 0 : i32
    %0 = arith.cmpi eq, %arg1, %c0_i32 : i32
    %1 = arith.extui %0 : i1 to i32
    %c0_i32_0 = arith.constant 0 : i32
    %2 = arith.cmpi ne, %1, %c0_i32_0 : i32
    scf.if %2 {
      %cst_10 = arith.constant 0.000000e+00 : f32
      %14 = vector.broadcast %cst_10 : f32 to vector<128x128xf32>
      %c0_11 = arith.constant 0 : index
      %c0_12 = arith.constant 0 : index
      %15 = vector.load %arg14[%c0_11, %c0_12] : memref<128x128xf32, #tpu.memory_space<vmem>>, vector<128x128xf32>
      tpu.vector_store %arg14[%c0_11, %c0_12], %14 {strides = array<i32>} : memref<128x128xf32, #tpu.memory_space<vmem>>, vector<128x128xf32>,
    } else {
    }
    %c0 = arith.constant 0 : index
    %c0_1 = arith.constant 0 : index
    %3 = vector.load %arg2[%c0, %c0_1] : memref<128x256xi8, #tpu.memory_space<vmem>>, vector<128x256xi8>
    %4 = arith.sitofp %3 : vector<128x256xi8> to vector<128x256xf32>
    %5 = arith.truncf %4 : vector<128x256xf32> to vector<128x256xbf16>
    %c0_2 = arith.constant 0 : index
    %c0_3 = arith.constant 0 : index
    %6 = vector.load %arg3[%c0_2, %c0_3] : memref<256x128xbf16, #tpu.memory_space<vmem>>, vector<256x128xbf16>
    %c0_4 = arith.constant 0 : index
    %c0_5 = arith.constant 0 : index
    %7 = vector.load %arg14[%c0_4, %c0_5] : memref<128x128xf32, #tpu.memory_space<vmem>>, vector<128x128xf32>
    %cst = arith.constant dense<0.000000e+00> : vector<128x128xf32>
    %8 = tpu.matmul %5, %6, %cst {dimension_numbers = #tpu.dot_dimension_numbers<[1], [0], [0], [1], [0, 0, 1, 1], [], []>} : vector<128x256xbf16>, vector<256x128xbf16>, vector<128x128xf32> -> vector<128x128xf32>
    %9 = arith.addf %7, %8 : vector<128x128xf32>
    %c0_6 = arith.constant 0 : index
    %c0_7 = arith.constant 0 : index
    %10 = vector.load %arg14[%c0_6, %c0_7] : memref<128x128xf32, #tpu.memory_space<vmem>>, vector<128x128xf32>
    tpu.vector_store %arg14[%c0_6, %c0_7], %9 {strides = array<i32>} : memref<128x128xf32, #tpu.memory_space<vmem>>, vector<128x128xf32>,
    %c0_i32_8 = arith.constant 0 : i32
    %11 = arith.cmpi eq, %arg1, %c0_i32_8 : i32
    %12 = arith.extui %11 : i1 to i32
    %c0_i32_9 = arith.constant 0 : i32
    %13 = arith.cmpi ne, %12, %c0_i32_9 : i32
    scf.if %13 {
      %c0_10 = arith.constant 0 : index
      %c0_11 = arith.constant 0 : index
      %14 = vector.load %arg14[%c0_10, %c0_11] : memref<128x128xf32, #tpu.memory_space<vmem>>, vector<128x128xf32>
      %c0_12 = arith.constant 0 : index
      %c0_13 = arith.constant 0 : index
      %15 = vector.load %arg5[%c0_12, %c0_13] : memref<128x1xf32, #tpu.memory_space<vmem>>, vector<128x1xf32>
      %16 = vector.broadcast %15 : vector<128x1xf32> to vector<128x128xf32>
      %17 = arith.mulf %14, %16 : vector<128x128xf32>
      %18 = arith.truncf %17 : vector<128x128xf32> to vector<128x128xbf16>
      %c0_14 = arith.constant 0 : index
      %c0_15 = arith.constant 0 : index
      %19 = vector.load %arg6[%c0_14, %c0_15] : memref<128x128xbf16, #tpu.memory_space<vmem>>, vector<128x128xbf16>
      %cst_16 = arith.constant dense<0.000000e+00> : vector<128x128xf32>
      %20 = tpu.matmul %18, %19, %cst_16 {dimension_numbers = #tpu.dot_dimension_numbers<[1], [0], [0], [1], [0, 0, 1, 1], [], []>} : vector<128x128xbf16>, vector<128x128xbf16>, vector<128x128xf32> -> vector<128x128xf32>
      %c0_17 = arith.constant 0 : index
      %c0_18 = arith.constant 0 : index
      %21 = vector.load %arg4[%c0_17, %c0_18] : memref<128x128xbf16, #tpu.memory_space<vmem>>, vector<128x128xbf16>
      %c0_19 = arith.constant 0 : index
      %c0_20 = arith.constant 0 : index
      %22 = vector.load %arg7[%c0_19, %c0_20] : memref<128x128xbf16, #tpu.memory_space<vmem>>, vector<128x128xbf16>
      %cst_21 = arith.constant dense<0.000000e+00> : vector<128x128xf32>
      %23 = tpu.matmul %21, %22, %cst_21 {dimension_numbers = #tpu.dot_dimension_numbers<[1], [0], [0], [1], [0, 0, 1, 1], [], []>} : vector<128x128xbf16>, vector<128x128xbf16>, vector<128x128xf32> -> vector<128x128xf32>
      %24 = arith.addf %20, %23 : vector<128x128xf32>
      %c0_22 = arith.constant 0 : index
      %c0_23 = arith.constant 0 : index
      %25 = vector.load %arg8[%c0_22, %c0_23] : memref<1x128xf32, #tpu.memory_space<vmem>>, vector<1x128xf32>
      %26 = vector.broadcast %25 : vector<1x128xf32> to vector<128x128xf32>
      %27 = arith.addf %24, %26 : vector<128x128xf32>
      %cst_24 = arith.constant 0.000000e+00 : f32
      %28 = vector.broadcast %cst_24 : f32 to vector<128x128xf32>
      %29 = arith.maximumf %27, %28 : vector<128x128xf32>
      %30 = arith.truncf %29 : vector<128x128xf32> to vector<128x128xbf16>
      %c0_25 = arith.constant 0 : index
      %c0_26 = arith.constant 0 : index
      %31 = vector.load %arg9[%c0_25, %c0_26] : memref<128x128xbf16, #tpu.memory_space<vmem>>, vector<128x128xbf16>
      %cst_27 = arith.constant dense<0.000000e+00> : vector<128x128xf32>
      %32 = tpu.matmul %30, %31, %cst_27 {dimension_numbers = #tpu.dot_dimension_numbers<[1], [0], [0], [1], [0, 0, 1, 1], [], []>} : vector<128x128xbf16>, vector<128x128xbf16>, vector<128x128xf32> -> vector<128x128xf32>
      %33 = arith.truncf %32 : vector<128x128xf32> to vector<128x128xbf16>
      %c0_28 = arith.constant 0 : index
      %c0_29 = arith.constant 0 : index
      %34 = vector.load %arg12[%c0_28, %c0_29] : memref<128x128xbf16, #tpu.memory_space<vmem>>, vector<128x128xbf16>
      tpu.vector_store %arg12[%c0_28, %c0_29], %33 {strides = array<i32>} : memref<128x128xbf16, #tpu.memory_space<vmem>>, vector<128x128xbf16>,
      %c0_30 = arith.constant 0 : index
      %c0_31 = arith.constant 0 : index
      %35 = vector.load %arg10[%c0_30, %c0_31] : memref<128x128xbf16, #tpu.memory_space<vmem>>, vector<128x128xbf16>
      %cst_32 = arith.constant dense<0.000000e+00> : vector<128x128xf32>
      %36 = tpu.matmul %30, %35, %cst_32 {dimension_numbers = #tpu.dot_dimension_numbers<[1], [0], [0], [1], [0, 0, 1, 1], [], []>} : vector<128x128xbf16>, vector<128x128xbf16>, vector<128x128xf32> -> vector<128x128xf32>
      %c0_33 = arith.constant 0 : index
      %c0_34 = arith.constant 0 : index
      %37 = vector.load %arg11[%c0_33, %c0_34] : memref<1x128xf32, #tpu.memory_space<vmem>>, vector<1x128xf32>
      %38 = vector.broadcast %37 : vector<1x128xf32> to vector<128x128xf32>
      %39 = arith.addf %36, %38 : vector<128x128xf32>
      %c0_35 = arith.constant 0 : index
      %c0_36 = arith.constant 0 : index
      %40 = vector.load %arg13[%c0_35, %c0_36] : memref<128x128xf32, #tpu.memory_space<vmem>>, vector<128x128xf32>
      tpu.vector_store %arg13[%c0_35, %c0_36], %39 {strides = array<i32>} : memref<128x128xf32, #tpu.memory_space<vmem>>, vector<128x128xf32>,
    } else {
    }
    return
  }
  func.func @transform_0(%arg0: i32, %arg1: i32) -> (i32, i32) {
    %c0_i32 = arith.constant 0 : i32
    return %arg0, %arg1 : i32, i32
  }
  func.func @transform_1(%arg0: i32, %arg1: i32) -> (i32, i32) {
    %c0_i32 = arith.constant 0 : i32
    %c0_i32_0 = arith.constant 0 : i32
    return %arg1, %c0_i32 : i32, i32
  }
  func.func @transform_2(%arg0: i32, %arg1: i32) -> (i32, i32) {
    %c0_i32 = arith.constant 0 : i32
    %c0_i32_0 = arith.constant 0 : i32
    return %arg0, %c0_i32 : i32, i32
  }
  func.func @transform_3(%arg0: i32, %arg1: i32) -> (i32, i32) {
    %c0_i32 = arith.constant 0 : i32
    %c0_i32_0 = arith.constant 0 : i32
    return %arg0, %c0_i32 : i32, i32
  }
  func.func @transform_4(%arg0: i32, %arg1: i32) -> (i32, i32) {
    %c0_i32 = arith.constant 0 : i32
    %c0_i32_0 = arith.constant 0 : i32
    %c0_i32_1 = arith.constant 0 : i32
    return %c0_i32, %c0_i32_0 : i32, i32
  }
  func.func @transform_5(%arg0: i32, %arg1: i32) -> (i32, i32) {
    %c0_i32 = arith.constant 0 : i32
    %c0_i32_0 = arith.constant 0 : i32
    %c0_i32_1 = arith.constant 0 : i32
    return %c0_i32, %c0_i32_0 : i32, i32
  }
  func.func @transform_6(%arg0: i32, %arg1: i32) -> (i32, i32) {
    %c0_i32 = arith.constant 0 : i32
    %c0_i32_0 = arith.constant 0 : i32
    %c0_i32_1 = arith.constant 0 : i32
    return %c0_i32, %c0_i32_0 : i32, i32
  }
  func.func @transform_7(%arg0: i32, %arg1: i32) -> (i32, i32) {
    %c0_i32 = arith.constant 0 : i32
    %c0_i32_0 = arith.constant 0 : i32
    %c0_i32_1 = arith.constant 0 : i32
    return %c0_i32, %c0_i32_0 : i32, i32
  }
  func.func @transform_8(%arg0: i32, %arg1: i32) -> (i32, i32) {
    %c0_i32 = arith.constant 0 : i32
    %c0_i32_0 = arith.constant 0 : i32
    %c0_i32_1 = arith.constant 0 : i32
    return %c0_i32, %c0_i32_0 : i32, i32
  }
  func.func @transform_9(%arg0: i32, %arg1: i32) -> (i32, i32) {
    %c0_i32 = arith.constant 0 : i32
    %c0_i32_0 = arith.constant 0 : i32
    %c0_i32_1 = arith.constant 0 : i32
    return %c0_i32, %c0_i32_0 : i32, i32
  }
  func.func @transform_10(%arg0: i32, %arg1: i32) -> (i32, i32) {
    %c0_i32 = arith.constant 0 : i32
    %c0_i32_0 = arith.constant 0 : i32
    return %arg0, %c0_i32 : i32, i32
  }
  func.func @transform_11(%arg0: i32, %arg1: i32) -> (i32, i32) {
    %c0_i32 = arith.constant 0 : i32
    %c0_i32_0 = arith.constant 0 : i32
    return %arg0, %c0_i32 : i32, i32
  }
}

</mosaic_0001>

<llo_original>
// kernel: tpu_custom_call.1
$region0: #{tpu_custom_call.1}
  #allocation0 [shape = 'u32[]', space=smem, size = 0x4, offset = 0x4, fixed_abs, tag = 'smem constant byte address 0x4 - core index']
  #allocation1 [shape = 'u32[144,128]{1,0:T(1,128)}', space=vmem, size = 0x12000, scoped, tag = 'internal scratch']
  #allocation2 [shape = 'f32[128,128]{1,0:T(8,128)}', space=vmem, size = 0x10000, scoped, tag = 'scratch operand']
  %s0 = inlined_call_operand.vmem [shape: s8[256,256], index: 0, kind: input, shape index: {}]
  %s1 = inlined_call_operand.vmem [shape: bf16[256,128], index: 1, kind: input, shape index: {}]
  %s2 = inlined_call_operand.hbm [shape: bf16[256,128], index: 2, kind: input, shape index: {}]
  %s3 = inlined_call_operand.vmem [shape: f32[256,1], index: 3, kind: input, shape index: {}]
  %s4 = inlined_call_operand.hbm [shape: bf16[128,128], index: 4, kind: input, shape index: {}]
  %s5 = inlined_call_operand.hbm [shape: bf16[128,128], index: 5, kind: input, shape index: {}]
  %s6 = inlined_call_operand.vmem [shape: f32[1,128], index: 6, kind: input, shape index: {}]
  %s7 = inlined_call_operand.hbm [shape: bf16[128,128], index: 7, kind: input, shape index: {}]
  %s8 = inlined_call_operand.hbm [shape: bf16[128,128], index: 8, kind: input, shape index: {}]
  %s9 = inlined_call_operand.vmem [shape: f32[1,128], index: 9, kind: input, shape index: {}]
  %s10 = inlined_call_operand.hbm [shape: bf16[256,128], index: 10, kind: output, shape index: {0}]
  %s11 = inlined_call_operand.hbm [shape: f32[256,128], index: 11, kind: output, shape index: {1}]
  %12 = xla_tuple %s10, %s11
  %s13 = sld [smem:[#allocation0]]
  $region109: #{tpu_custom_call.1} parent=0
    _
  %s15 = ssub.s32 1, %s13
  %s16 = scalar_select 0, %s15, %s13
  $region1: #{tpu_custom_call.1} parent=0
    #allocation3 [shape = 'u8[65536]{0}', space=vmem, size = 0x10000, scoped, tag = 'input window, operand 2']
    #allocation4 [shape = 's32[2]{0}', space=sflag, size = 0x8, scoped, tag = 'scoped memory for tpu_custom_call.1']
    #allocation5 [shape = 's32[2]{0}', space=sflag, size = 0x8, scoped, tag = 'scoped memory for tpu_custom_call.1']
    #allocation6 [shape = 'u8[32768]{0}', space=vmem, size = 0x8000, scoped, tag = 'input window, operand 4, single buffered']
    #allocation7 [shape = 's32[1]{0}', space=sflag, size = 0x4, scoped, tag = 'scoped memory for tpu_custom_call.1']
    #allocation8 [shape = 'u8[32768]{0}', space=vmem, size = 0x8000, scoped, tag = 'input window, operand 5, single buffered']
    #allocation9 [shape = 'u8[32768]{0}', space=vmem, size = 0x8000, scoped, tag = 'input window, operand 7, single buffered']
    #allocation10 [shape = 's32[1]{0}', space=sflag, size = 0x4, scoped, tag = 'scoped memory for tpu_custom_call.1']
    #allocation11 [shape = 'u8[32768]{0}', space=vmem, size = 0x8000, scoped, tag = 'input window, operand 8, single buffered']
    #allocation12 [shape = 'u8[65536]{0}', space=vmem, size = 0x10000, scoped, tag = 'output window, operand 0']
    #allocation13 [shape = 'u8[131072]{0}', space=vmem, size = 0x20000, scoped, tag = 'output window, operand 1']
    #allocation14 [shape = 's32[2]{0}', space=sflag, size = 0x8, scoped, tag = 'scoped memory for tpu_custom_call.1']
    %17 = vsyncpa [#allocation4], 0
    %s18 = scalar_lea.sflag [#allocation4], 1
    %19 = vsyncpa %s18, 0
    %20 = vsyncpa [#allocation7], 0
    %21 = vsyncpa [#allocation10], 0
    %22 = vsyncpa [#allocation5], 0
    %s23 = scalar_lea.sflag [#allocation5], 1
    %24 = vsyncpa %s23, 0
    %25 = vsyncpa [#allocation14], 0
    %s26 = scalar_lea.sflag [#allocation14], 1
    %27 = vsyncpa %s26, 0
    loop: start=0, step=1, limit=4
    $region2: #{tpu_custom_call.1} parent=1 // loop_pre_header
      _
    $region3: #{tpu_custom_call.1} parent=1 // loop_header
      %s29 = sphi 0, %s33
      %p30 = scmp.ge.s32.totalorder %s29, 4
      %s36 = sphi 0, %s48
      %s37 = sphi 0, %s44
      %s38 = sphi 0, %s36
      %s39 = sphi 0, %s37
      %s40 = sphi 0, %s38
      %s41 = sphi 0, %s39
      %s53 = sphi 0, %s55
      %s56 = sphi 0, %s53
      %s57 = sphi 0, %s56
      %s73 = sphi 0, %s57
      %s79 = sphi 0, %s81
      %s82 = sphi 0, %s79
      %s83 = sphi 0, %s82
      %s99 = sphi 0, %s83
      %s105 = sphi 0, %s107
      %s108 = sphi 0, %s105
      %s109 = sphi 0, %s108
      %s125 = sphi 0, %s109
      %s131 = sphi 0, %s133
      %s134 = sphi 0, %s131
      %s135 = sphi 0, %s134
      %s151 = sphi 0, %s135
      %s155 = sphi 0, %s155
      %s157 = sphi 0, %s155
      %s158 = sphi 0, %s157
      %s172 = sphi 0, %s158
      %s176 = sphi 0, %s176
      %s178 = sphi 0, %s176
      %s179 = sphi 0, %s178
      %s193 = sphi 0, %s179
      %s197 = sphi 0, %s197
      %s199 = sphi 0, %s197
      %s200 = sphi 0, %s199
      %s214 = sphi 0, %s200
      %s218 = sphi 0, %s218
      %s220 = sphi 0, %s218
      %s221 = sphi 0, %s220
      %s235 = sphi 0, %s221
      %s239 = sphi 0, %s239
      %s241 = sphi 0, %s239
      %s242 = sphi 0, %s241
      %s256 = sphi 0, %s242
      %s260 = sphi 0, %s260
      %s262 = sphi 0, %s260
      %s263 = sphi 0, %s262
      %s277 = sphi 0, %s263
      %s283 = sphi 0, %s285
      %s286 = sphi 0, %s283
      %s287 = sphi 0, %s286
      %s303 = sphi 0, %s287
      %s309 = sphi 0, %s311
      %s312 = sphi 0, %s309
      %s313 = sphi 0, %s312
      %s329 = sphi 0, %s313
    $region4: #{tpu_custom_call.1} parent=1 // loop_header_branch
      %32 = sbr.rel (%p30) target = $region8
    $region5: #{tpu_custom_call.1} parent=1 // loop_body
      %s34 = ssub.s32 %s29, 1
      %s35 = ssub.s32 %s29, 2
      %s42 = sadd.s32 1, %s37
      %p43 = scmp.ge.s32.totalorder %s42, 1
      %s44 = scalar_select %p43, 0, %s42
      %s45 = sadd.s32 1, %s36
      %s46 = scalar_select %p43, %s45, %s36
      %p47 = scmp.ge.s32.totalorder %s46, 2
      %s48 = scalar_select %p47, 0, %s46
      %s49 = ssub.s32 %s36, %s48
      %s50 = ssub.s32 %s37, %s44
      %s51 = sor.u32 %s49, %s50
      %p52 = scmp.eq.s32.totalorder %s51, 0
      %s54 = sadd.s32 %s53, 1
      %s55 = scalar_select %p52, %s53, %s54
      %p58 = pneg %p52
      %p59 = scmp.eq.s32.totalorder %s29, 1
      %p60 = por %p58, %p59
      %p61 = scmp.ne.s32.totalorder %s53, %s56
      %p62 = scmp.eq.s32.totalorder %s29, 0
      %p63 = por %p61, %p62
      %p64 = scmp.ne.s32.totalorder %s53, %s56
      %p65 = scmp.eq.s32.totalorder %s34, 1
      %p66 = por %p64, %p65
      %p67 = scmp.ne.s32.totalorder %s56, %s57
      %p68 = scmp.eq.s32.totalorder %s34, 0
      %p69 = por %p67, %p68
      %p70 = scmp.ne.s32.totalorder %s56, %s57
      %p71 = scmp.eq.s32.totalorder %s35, 1
      %p72 = por %p70, %p71
      %p74 = scmp.ne.s32.totalorder %s57, %s73
      %p75 = scmp.eq.s32.totalorder %s35, 0
      %p76 = por %p74, %p75
      %s77 = ssub.s32 %s37, %s44
      %p78 = scmp.eq.s32.totalorder %s77, 0
      %s80 = sadd.s32 %s79, 1
      %s81 = scalar_select %p78, %s79, %s80
      %p84 = pneg %p78
      %p85 = scmp.eq.s32.totalorder %s29, 1
      %p86 = por %p84, %p85
      %p87 = scmp.ne.s32.totalorder %s79, %s82
      %p88 = scmp.eq.s32.totalorder %s29, 0
      %p89 = por %p87, %p88
      %p90 = scmp.ne.s32.totalorder %s79, %s82
      %p91 = scmp.eq.s32.totalorder %s34, 1
      %p92 = por %p90, %p91
      %p93 = scmp.ne.s32.totalorder %s82, %s83
      %p94 = scmp.eq.s32.totalorder %s34, 0
      %p95 = por %p93, %p94
      %p96 = scmp.ne.s32.totalorder %s82, %s83
      %p97 = scmp.eq.s32.totalorder %s35, 1
      %p98 = por %p96, %p97
      %p100 = scmp.ne.s32.totalorder %s83, %s99
      %p101 = scmp.eq.s32.totalorder %s35, 0
      %p102 = por %p100, %p101
      %s103 = ssub.s32 %s36, %s48
      %p104 = scmp.eq.s32.totalorder %s103, 0
      %s106 = sadd.s32 %s105, 1
      %s107 = scalar_select %p104, %s105, %s106
      %p110 = pneg %p104
      %p111 = scmp.eq.s32.totalorder %s29, 1
      %p112 = por %p110, %p111
      %p113 = scmp.ne.s32.totalorder %s105, %s108
      %p114 = scmp.eq.s32.totalorder %s29, 0
      %p115 = por %p113, %p114
      %p116 = scmp.ne.s32.totalorder %s105, %s108
      %p117 = scmp.eq.s32.totalorder %s34, 1
      %p118 = por %p116, %p117
      %p119 = scmp.ne.s32.totalorder %s108, %s109
      %p120 = scmp.eq.s32.totalorder %s34, 0
      %p121 = por %p119, %p120
      %p122 = scmp.ne.s32.totalorder %s108, %s109
      %p123 = scmp.eq.s32.totalorder %s35, 1
      %p124 = por %p122, %p123
      %p126 = scmp.ne.s32.totalorder %s109, %s125
      %p127 = scmp.eq.s32.totalorder %s35, 0
      %p128 = por %p126, %p127
      %s129 = ssub.s32 %s36, %s48
      %p130 = scmp.eq.s32.totalorder %s129, 0
      %s132 = sadd.s32 %s131, 1
      %s133 = scalar_select %p130, %s131, %s132
      %p136 = pneg %p130
      %p137 = scmp.eq.s32.totalorder %s29, 1
      %p138 = por %p136, %p137
      %p139 = scmp.ne.s32.totalorder %s131, %s134
      %p140 = scmp.eq.s32.totalorder %s29, 0
      %p141 = por %p139, %p140
      %p142 = scmp.ne.s32.totalorder %s131, %s134
      %p143 = scmp.eq.s32.totalorder %s34, 1
      %p144 = por %p142, %p143
      %p145 = scmp.ne.s32.totalorder %s134, %s135
      %p146 = scmp.eq.s32.totalorder %s34, 0
      %p147 = por %p145, %p146
      %p148 = scmp.ne.s32.totalorder %s134, %s135
      %p149 = scmp.eq.s32.totalorder %s35, 1
      %p150 = por %p148, %p149
      %p152 = scmp.ne.s32.totalorder %s135, %s151
      %p153 = scmp.eq.s32.totalorder %s35, 0
      %p154 = por %p152, %p153
      %s156 = sadd.s32 %s155, 1
      %p159 = scmp.eq.s32.totalorder %s29, 1
      %p160 = scmp.ne.s32.totalorder %s155, %s157
      %p161 = scmp.eq.s32.totalorder %s29, 0
      %p162 = por %p160, %p161
      %p163 = scmp.ne.s32.totalorder %s155, %s157
      %p164 = scmp.eq.s32.totalorder %s34, 1
      %p165 = por %p163, %p164
      %p166 = scmp.ne.s32.totalorder %s157, %s158
      %p167 = scmp.eq.s32.totalorder %s34, 0
      %p168 = por %p166, %p167
      %p169 = scmp.ne.s32.totalorder %s157, %s158
      %p170 = scmp.eq.s32.totalorder %s35, 1
      %p171 = por %p169, %p170
      %p173 = scmp.ne.s32.totalorder %s158, %s172
      %p174 = scmp.eq.s32.totalorder %s35, 0
      %p175 = por %p173, %p174
      %s177 = sadd.s32 %s176, 1
      %p180 = scmp.eq.s32.totalorder %s29, 1
      %p181 = scmp.ne.s32.totalorder %s176, %s178
      %p182 = scmp.eq.s32.totalorder %s29, 0
      %p183 = por %p181, %p182
      %p184 = scmp.ne.s32.totalorder %s176, %s178
      %p185 = scmp.eq.s32.totalorder %s34, 1
      %p186 = por %p184, %p185
      %p187 = scmp.ne.s32.totalorder %s178, %s179
      %p188 = scmp.eq.s32.totalorder %s34, 0
      %p189 = por %p187, %p188
      %p190 = scmp.ne.s32.totalorder %s178, %s179
      %p191 = scmp.eq.s32.totalorder %s35, 1
      %p192 = por %p190, %p191
      %p194 = scmp.ne.s32.totalorder %s179, %s193
      %p195 = scmp.eq.s32.totalorder %s35, 0
      %p196 = por %p194, %p195
      %s198 = sadd.s32 %s197, 1
      %p201 = scmp.eq.s32.totalorder %s29, 1
      %p202 = scmp.ne.s32.totalorder %s197, %s199
      %p203 = scmp.eq.s32.totalorder %s29, 0
      %p204 = por %p202, %p203
      %p205 = scmp.ne.s32.totalorder %s197, %s199
      %p206 = scmp.eq.s32.totalorder %s34, 1
      %p207 = por %p205, %p206
      %p208 = scmp.ne.s32.totalorder %s199, %s200
      %p209 = scmp.eq.s32.totalorder %s34, 0
      %p210 = por %p208, %p209
      %p211 = scmp.ne.s32.totalorder %s199, %s200
      %p212 = scmp.eq.s32.totalorder %s35, 1
      %p213 = por %p211, %p212
      %p215 = scmp.ne.s32.totalorder %s200, %s214
      %p216 = scmp.eq.s32.totalorder %s35, 0
      %p217 = por %p215, %p216
      %s219 = sadd.s32 %s218, 1
      %p222 = scmp.eq.s32.totalorder %s29, 1
      %p223 = scmp.ne.s32.totalorder %s218, %s220
      %p224 = scmp.eq.s32.totalorder %s29, 0
      %p225 = por %p223, %p224
      %p226 = scmp.ne.s32.totalorder %s218, %s220
      %p227 = scmp.eq.s32.totalorder %s34, 1
      %p228 = por %p226, %p227
      %p229 = scmp.ne.s32.totalorder %s220, %s221
      %p230 = scmp.eq.s32.totalorder %s34, 0
      %p231 = por %p229, %p230
      %p232 = scmp.ne.s32.totalorder %s220, %s221
      %p233 = scmp.eq.s32.totalorder %s35, 1
      %p234 = por %p232, %p233
      %p236 = scmp.ne.s32.totalorder %s221, %s235
      %p237 = scmp.eq.s32.totalorder %s35, 0
      %p238 = por %p236, %p237
      %s240 = sadd.s32 %s239, 1
      %p243 = scmp.eq.s32.totalorder %s29, 1
      %p244 = scmp.ne.s32.totalorder %s239, %s241
      %p245 = scmp.eq.s32.totalorder %s29, 0
      %p246 = por %p244, %p245
      %p247 = scmp.ne.s32.totalorder %s239, %s241
      %p248 = scmp.eq.s32.totalorder %s34, 1
      %p249 = por %p247, %p248
      %p250 = scmp.ne.s32.totalorder %s241, %s242
      %p251 = scmp.eq.s32.totalorder %s34, 0
      %p252 = por %p250, %p251
      %p253 = scmp.ne.s32.totalorder %s241, %s242
      %p254 = scmp.eq.s32.totalorder %s35, 1
      %p255 = por %p253, %p254
      %p257 = scmp.ne.s32.totalorder %s242, %s256
      %p258 = scmp.eq.s32.totalorder %s35, 0
      %p259 = por %p257, %p258
      %s261 = sadd.s32 %s260, 1
      %p264 = scmp.eq.s32.totalorder %s29, 1
      %p265 = scmp.ne.s32.totalorder %s260, %s262
      %p266 = scmp.eq.s32.totalorder %s29, 0
      %p267 = por %p265, %p266
      %p268 = scmp.ne.s32.totalorder %s260, %s262
      %p269 = scmp.eq.s32.totalorder %s34, 1
      %p270 = por %p268, %p269
      %p271 = scmp.ne.s32.totalorder %s262, %s263
      %p272 = scmp.eq.s32.totalorder %s34, 0
      %p273 = por %p271, %p272
      %p274 = scmp.ne.s32.totalorder %s262, %s263
      %p275 = scmp.eq.s32.totalorder %s35, 1
      %p276 = por %p274, %p275
      %p278 = scmp.ne.s32.totalorder %s263, %s277
      %p279 = scmp.eq.s32.totalorder %s35, 0
      %p280 = por %p278, %p279
      %s281 = ssub.s32 %s36, %s48
      %p282 = scmp.eq.s32.totalorder %s281, 0
      %s284 = sadd.s32 %s283, 1
      %s285 = scalar_select %p282, %s283, %s284
      %p288 = pneg %p282
      %p289 = scmp.eq.s32.totalorder %s29, 1
      %p290 = por %p288, %p289
      %p291 = scmp.ne.s32.totalorder %s283, %s286
      %p292 = scmp.eq.s32.totalorder %s29, 0
      %p293 = por %p291, %p292
      %p294 = scmp.ne.s32.totalorder %s283, %s286
      %p295 = scmp.eq.s32.totalorder %s34, 1
      %p296 = por %p294, %p295
      %p297 = scmp.ne.s32.totalorder %s286, %s287
      %p298 = scmp.eq.s32.totalorder %s34, 0
      %p299 = por %p297, %p298
      %p300 = scmp.ne.s32.totalorder %s286, %s287
      %p301 = scmp.eq.s32.totalorder %s35, 1
      %p302 = por %p300, %p301
      %p304 = scmp.ne.s32.totalorder %s287, %s303
      %p305 = scmp.eq.s32.totalorder %s35, 0
      %p306 = por %p304, %p305
      %s307 = ssub.s32 %s36, %s48
      %p308 = scmp.eq.s32.totalorder %s307, 0
      %s310 = sadd.s32 %s309, 1
      %s311 = scalar_select %p308, %s309, %s310
      %p314 = pneg %p308
      %p315 = scmp.eq.s32.totalorder %s29, 1
      %p316 = por %p314, %p315
      %p317 = scmp.ne.s32.totalorder %s309, %s312
      %p318 = scmp.eq.s32.totalorder %s29, 0
      %p319 = por %p317, %p318
      %p320 = scmp.ne.s32.totalorder %s309, %s312
      %p321 = scmp.eq.s32.totalorder %s34, 1
      %p322 = por %p320, %p321
      %p323 = scmp.ne.s32.totalorder %s312, %s313
      %p324 = scmp.eq.s32.totalorder %s34, 0
      %p325 = por %p323, %p324
      %p326 = scmp.ne.s32.totalorder %s312, %s313
      %p327 = scmp.eq.s32.totalorder %s35, 1
      %p328 = por %p326, %p327
      %p330 = scmp.ne.s32.totalorder %s313, %s329
      %p331 = scmp.eq.s32.totalorder %s35, 0
      %p332 = por %p330, %p331
      %p333 = scmp.le.s32.totalorder 1, %s29
      %p334 = scmp.lt.s32.totalorder %s29, 3
      %p335 = pnand %p333, %p334
      %p336 = pneg %p335
      // Predicated region
      $region9: #{tpu_custom_call.1} parent=5 // pred_check
        _
      $region10: #{tpu_custom_call.1} parent=5 // pred_check_branch
        %338 = sbr.rel (%p335) target = $region12
      $region11: #{tpu_custom_call.1} parent=5 // pred_region
        %s339 = ssub.s32 %s29, 1
        // Predicated region
        $region13: #{tpu_custom_call.1} parent=11 // pred_check
          %p340 = pneg %p95
        $region14: #{tpu_custom_call.1} parent=11 // pred_check_branch
          %342 = sbr.rel (%p340) target = $region16
        $region15: #{tpu_custom_call.1} parent=11 // pred_region
          %s343 = smul.u32 32, %s39
          %p344 = scmp.lt.s32.totalorder %s343, 31
          %s345 = scalar_select %p344, %s343, 31
          %s346 = smul.addr %s345, 4
          %s347 = scalar_lea.vmem %s1, %s346
          %s348 = smul.u32 32, %s39
        $region16: #{tpu_custom_call.1} parent=11 // pred_fallthru
          _
        // Predicated region
        $region17: #{tpu_custom_call.1} parent=11 // pred_check
          %p349 = pneg %p168
        $region18: #{tpu_custom_call.1} parent=11 // pred_check_branch
          %351 = sbr.rel (%p349) target = $region20
        $region19: #{tpu_custom_call.1} parent=11 // pred_region
          %s353 = ssub.s32 1024, 1024
          %354 = vsyncadd [#allocation7], %s353
          %s355 = sshll.u32 [#allocation6], 4
          %s356 = int_to_ptr.vmem [resolvable:$true] %s355
          %361 = dma.hbm_to_vmem [thread:$0]  %s4, 1024, %s356, [#allocation7], 64, 64, 4
        $region20: #{tpu_custom_call.1} parent=11 // pred_fallthru
          _
        // Predicated region
        $region21: #{tpu_custom_call.1} parent=11 // pred_check
          %p362 = pneg %p189
        $region22: #{tpu_custom_call.1} parent=11 // pred_check_branch
          %364 = sbr.rel (%p362) target = $region24
        $region23: #{tpu_custom_call.1} parent=11 // pred_region
          %s366 = ssub.s32 1024, 1024
          %367 = vsyncadd [#allocation7], %s366
          %s368 = sshll.u32 [#allocation8], 4
          %s369 = int_to_ptr.vmem [resolvable:$true] %s368
          %374 = dma.hbm_to_vmem [thread:$0]  %s5, 1024, %s369, [#allocation7], 64, 64, 4
        $region24: #{tpu_custom_call.1} parent=11 // pred_fallthru
          _
        // Predicated region
        $region25: #{tpu_custom_call.1} parent=11 // pred_check
          %p375 = pneg %p210
        $region26: #{tpu_custom_call.1} parent=11 // pred_check_branch
          %377 = sbr.rel (%p375) target = $region28
        $region27: #{tpu_custom_call.1} parent=11 // pred_region
          _
        $region28: #{tpu_custom_call.1} parent=11 // pred_fallthru
          _
        // Predicated region
        $region29: #{tpu_custom_call.1} parent=11 // pred_check
          %p378 = pneg %p231
        $region30: #{tpu_custom_call.1} parent=11 // pred_check_branch
          %380 = sbr.rel (%p378) target = $region32
        $region31: #{tpu_custom_call.1} parent=11 // pred_region
          %s382 = ssub.s32 1024, 1024
          %383 = vsyncadd [#allocation10], %s382
          %s384 = sshll.u32 [#allocation9], 4
          %s385 = int_to_ptr.vmem [resolvable:$true] %s384
          %390 = dma.hbm_to_vmem [thread:$0]  %s7, 1024, %s385, [#allocation10], 64, 64, 4
        $region32: #{tpu_custom_call.1} parent=11 // pred_fallthru
          _
        // Predicated region
        $region33: #{tpu_custom_call.1} parent=11 // pred_check
          %p391 = pneg %p252
        $region34: #{tpu_custom_call.1} parent=11 // pred_check_branch
          %393 = sbr.rel (%p391) target = $region36
        $region35: #{tpu_custom_call.1} parent=11 // pred_region
          %s395 = ssub.s32 1024, 1024
          %396 = vsyncadd [#allocation10], %s395
          %s397 = sshll.u32 [#allocation11], 4
          %s398 = int_to_ptr.vmem [resolvable:$true] %s397
          %403 = dma.hbm_to_vmem [thread:$0]  %s8, 1024, %s398, [#allocation10], 64, 64, 4
        $region36: #{tpu_custom_call.1} parent=11 // pred_fallthru
          _
        // Predicated region
        $region37: #{tpu_custom_call.1} parent=11 // pred_check
          %p404 = pneg %p273
        $region38: #{tpu_custom_call.1} parent=11 // pred_check_branch
          %406 = sbr.rel (%p404) target = $region40
        $region39: #{tpu_custom_call.1} parent=11 // pred_region
          _
        $region40: #{tpu_custom_call.1} parent=11 // pred_fallthru
          _
      $region12: #{tpu_custom_call.1} parent=5 // pred_fallthru
        _
      %p407 = scmp.lt.s32.totalorder %s29, 2
      // Predicated region
      $region41: #{tpu_custom_call.1} parent=5 // pred_check
        %p408 = pneg %p407
      $region42: #{tpu_custom_call.1} parent=5 // pred_check_branch
        %410 = sbr.rel (%p408) target = $region44
      $region43: #{tpu_custom_call.1} parent=5 // pred_region
        // Predicated region
        $region45: #{tpu_custom_call.1} parent=43 // pred_check
          %p411 = pneg %p63
        $region46: #{tpu_custom_call.1} parent=43 // pred_check_branch
          %413 = sbr.rel (%p411) target = $region48
        $region47: #{tpu_custom_call.1} parent=43 // pred_region
          %s414 = smul.u32 4, %s36
          %s415 = smul.u32 2, %s37
          %p416 = scmp.lt.s32.totalorder %s414, 7
          %s417 = scalar_select %p416, %s414, 7
          %p418 = scmp.lt.s32.totalorder %s415, 1
          %s419 = scalar_select %p418, %s415, 1
          %s420 = smul.addr %s417, 2
          %s421 = sadd.s32 %s419, %s420
          %s422 = smul.addr %s421, 8
          %s423 = scalar_lea.vmem %s0, %s422
          %s424 = smul.u32 4, %s36
          %s425 = smul.u32 2, %s37
        $region48: #{tpu_custom_call.1} parent=43 // pred_fallthru
          _
        // Predicated region
        $region49: #{tpu_custom_call.1} parent=43 // pred_check
          %p426 = pneg %p115
        $region50: #{tpu_custom_call.1} parent=43 // pred_check_branch
          %428 = sbr.rel (%p426) target = $region52
        $region51: #{tpu_custom_call.1} parent=43 // pred_region
          %s429 = sand.u32 %s105, 1
          %s430 = scalar_lea.sflag [#allocation4], %s429
          %s431 = sand.u32 %s105, 1
          %s432 = smul.addr %s431, 64
          %s433 = scalar_lea.vmem [#allocation3], %s432
          %s434 = smul.u32 16, %s36
          %s436 = ssub.s32 1024, 1024
          %437 = vsyncadd %s430, %s436
          %s438 = smul.addr %s434, 64
          %s439 = scalar_lea.hbm %s2, %s438
          %s440 = sshll.u32 %s433, 4
          %s441 = int_to_ptr.vmem [resolvable:$true] %s440
          %446 = dma.hbm_to_vmem [thread:$0]  %s439, 1024, %s441, %s430, 64, 64, 4
        $region52: #{tpu_custom_call.1} parent=43 // pred_fallthru
          _
        // Predicated region
        $region53: #{tpu_custom_call.1} parent=43 // pred_check
          %p447 = pneg %p141
        $region54: #{tpu_custom_call.1} parent=43 // pred_check_branch
          %449 = sbr.rel (%p447) target = $region56
        $region55: #{tpu_custom_call.1} parent=43 // pred_region
          %s450 = smul.u32 16, %s36
          %p451 = scmp.lt.s32.totalorder %s450, 31
          %s452 = scalar_select %p451, %s450, 31
          %s453 = smul.addr %s452, 8
          %s454 = scalar_lea.vmem %s3, %s453
          %s455 = smul.u32 16, %s36
        $region56: #{tpu_custom_call.1} parent=43 // pred_fallthru
          _
      $region44: #{tpu_custom_call.1} parent=5 // pred_fallthru
        _
      %p456 = scmp.le.s32.totalorder 1, %s29
      %p457 = scmp.lt.s32.totalorder %s29, 3
      %p458 = pnand %p456, %p457
      %p459 = pneg %p458
      // Predicated region
      $region57: #{tpu_custom_call.1} parent=5 // pred_check
        _
      $region58: #{tpu_custom_call.1} parent=5 // pred_check_branch
        %461 = sbr.rel (%p458) target = $region60
      $region59: #{tpu_custom_call.1} parent=5 // pred_region
        %s462 = ssub.s32 %s29, 1
        %s463 = sand.u32 %s108, 1
        %s464 = scalar_lea.sflag [#allocation4], %s463
        %s465 = sand.u32 %s108, 1
        %s466 = smul.addr %s465, 64
        %s467 = scalar_lea.vmem [#allocation3], %s466
        // Predicated region
        $region61: #{tpu_custom_call.1} parent=59 // pred_check
          %p468 = pneg %p121
        $region62: #{tpu_custom_call.1} parent=59 // pred_check_branch
          %470 = sbr.rel (%p468) target = $region64
        $region63: #{tpu_custom_call.1} parent=59 // pred_region
          %471 = dma.done %s464, 1024
        $region64: #{tpu_custom_call.1} parent=59 // pred_fallthru
          _
        // Predicated region
        $region65: #{tpu_custom_call.1} parent=59 // pred_check
          %p472 = pneg %p168
        $region66: #{tpu_custom_call.1} parent=59 // pred_check_branch
          %474 = sbr.rel (%p472) target = $region68
        $region67: #{tpu_custom_call.1} parent=59 // pred_region
          %475 = dma.done [#allocation7], 1024
        $region68: #{tpu_custom_call.1} parent=59 // pred_fallthru
          _
        // Predicated region
        $region69: #{tpu_custom_call.1} parent=59 // pred_check
          %p476 = pneg %p189
        $region70: #{tpu_custom_call.1} parent=59 // pred_check_branch
          %478 = sbr.rel (%p476) target = $region72
        $region71: #{tpu_custom_call.1} parent=59 // pred_region
          %479 = dma.done [#allocation7], 1024
        $region72: #{tpu_custom_call.1} parent=59 // pred_fallthru
          _
        // Predicated region
        $region73: #{tpu_custom_call.1} parent=59 // pred_check
          %p480 = pneg %p231
        $region74: #{tpu_custom_call.1} parent=59 // pred_check_branch
          %482 = sbr.rel (%p480) target = $region76
        $region75: #{tpu_custom_call.1} parent=59 // pred_region
          %483 = dma.done [#allocation10], 1024
        $region76: #{tpu_custom_call.1} parent=59 // pred_fallthru
          _
        // Predicated region
        $region77: #{tpu_custom_call.1} parent=59 // pred_check
          %p484 = pneg %p252
        $region78: #{tpu_custom_call.1} parent=59 // pred_check_branch
          %486 = sbr.rel (%p484) target = $region80
        $region79: #{tpu_custom_call.1} parent=59 // pred_region
          %487 = dma.done [#allocation10], 1024
        $region80: #{tpu_custom_call.1} parent=59 // pred_fallthru
          _
        %s488 = smul.u32 4, %s38
        %s489 = smul.u32 2, %s39
        %p490 = scmp.lt.s32.totalorder %s488, 7
        %s491 = scalar_select %p490, %s488, 7
        %p492 = scmp.lt.s32.totalorder %s489, 1
        %s493 = scalar_select %p492, %s489, 1
        %s494 = smul.addr %s491, 2
        %s495 = sadd.s32 %s493, %s494
        %s496 = smul.addr %s495, 8
        %s497 = scalar_lea.vmem %s0, %s496
        %p498 = pneg %p69
        %p499 = pneg %p66
        %s500 = smul.u32 32, %s39
        %p501 = scmp.lt.s32.totalorder %s500, 31
        %s502 = scalar_select %p501, %s500, 31
        %s503 = smul.addr %s502, 4
        %s504 = scalar_lea.vmem %s1, %s503
        %p505 = pneg %p95
        %p506 = pneg %p92
        %s507 = sand.u32 %s108, 1
        %s508 = scalar_lea.sflag [#allocation4], %s507
        %s509 = sand.u32 %s108, 1
        %s510 = smul.addr %s509, 64
        %s511 = scalar_lea.vmem [#allocation3], %s510
        %p512 = pneg %p121
        %p513 = pneg %p118
        %s514 = smul.u32 16, %s38
        %p515 = scmp.lt.s32.totalorder %s514, 31
        %s516 = scalar_select %p515, %s514, 31
        %s517 = smul.addr %s516, 8
        %s518 = scalar_lea.vmem %s3, %s517
        %p519 = pneg %p147
        %p520 = pneg %p144
        %p521 = pneg %p168
        %p522 = pneg %p165
        %p523 = pneg %p189
        %p524 = pneg %p186
        %p525 = pneg %p210
        %p526 = pneg %p207
        %p527 = pneg %p231
        %p528 = pneg %p228
        %p529 = pneg %p252
        %p530 = pneg %p249
        %p531 = pneg %p273
        %p532 = pneg %p270
        %p533 = pneg %p299
        %p534 = pneg %p296
        %s535 = sand.u32 %s286, 1
        %s536 = scalar_lea.sflag [#allocation5], %s535
        %s537 = sand.u32 %s286, 1
        %s538 = smul.addr %s537, 64
        %s539 = scalar_lea.vmem [#allocation12], %s538
        %p540 = pneg %p325
        %p541 = pneg %p322
        %s542 = sand.u32 %s312, 1
        %s543 = scalar_lea.sflag [#allocation14], %s542
        %s544 = sand.u32 %s312, 1
        %s545 = smul.addr %s544, 128
        %s546 = scalar_lea.vmem [#allocation13], %s545
        %s547 = smul.u32 4, %s38
        %s548 = smul.u32 2, %s39
        %p549 = scmp.lt.s32.totalorder %s547, 7
        %s550 = scalar_select %p549, %s547, 7
        %p551 = scmp.lt.s32.totalorder %s548, 1
        %s552 = scalar_select %p551, %s548, 1
        %s553 = smul.addr %s550, 2
        %s554 = sadd.s32 %s552, %s553
        %s555 = smul.addr %s554, 8
        %s556 = scalar_lea.vmem %s0, %s555
        %s557 = smul.u32 4, %s38
        %s558 = smul.u32 2, %s39
        %s559 = smul.u32 32, %s39
        %p560 = scmp.lt.s32.totalorder %s559, 31
        %s561 = scalar_select %p560, %s559, 31
        %s562 = smul.addr %s561, 4
        %s563 = scalar_lea.vmem %s1, %s562
        %s564 = smul.u32 32, %s39
        %s565 = smul.u32 16, %s38
        %s566 = smul.u32 16, %s38
        %p567 = scmp.lt.s32.totalorder %s566, 31
        %s568 = scalar_select %p567, %s566, 31
        %s569 = smul.addr %s568, 8
        %s570 = scalar_lea.vmem %s3, %s569
        %s571 = smul.u32 16, %s38
        %s572 = smul.u32 16, %s38
        %s573 = smul.u32 16, %s38
        %p575 = scmp.eq.s32.totalorder %s39, 0
        // Predicated region
        $region81: #{tpu_custom_call.1} parent=59 // pred_check
          %p576 = pneg %p575
        $region82: #{tpu_custom_call.1} parent=59 // pred_check_branch
          %578 = sbr.rel (%p576) target = $region84
        $region83: #{tpu_custom_call.1} parent=59 // pred_region
          %579 = vst [vmem:[#allocation2] sm:$0xff] 0.0
          %580 = vst [vmem:[#allocation2 + $0x8] sm:$0xff] 0.0
          %581 = vst [vmem:[#allocation2 + $0x10] sm:$0xff] 0.0
          %582 = vst [vmem:[#allocation2 + $0x18] sm:$0xff] 0.0
          %583 = vst [vmem:[#allocation2 + $0x20] sm:$0xff] 0.0
          %584 = vst [vmem:[#allocation2 + $0x28] sm:$0xff] 0.0
          %585 = vst [vmem:[#allocation2 + $0x30] sm:$0xff] 0.0
          %586 = vst [vmem:[#allocation2 + $0x38] sm:$0xff] 0.0
          %587 = vst [vmem:[#allocation2 + $0x40] sm:$0xff] 0.0
          %588 = vst [vmem:[#allocation2 + $0x48] sm:$0xff] 0.0
          %589 = vst [vmem:[#allocation2 + $0x50] sm:$0xff] 0.0
          %590 = vst [vmem:[#allocation2 + $0x58] sm:$0xff] 0.0
          %591 = vst [vmem:[#allocation2 + $0x60] sm:$0xff] 0.0
          %592 = vst [vmem:[#allocation2 + $0x68] sm:$0xff] 0.0
          %593 = vst [vmem:[#allocation2 + $0x70] sm:$0xff] 0.0
          %594 = vst [vmem:[#allocation2 + $0x78] sm:$0xff] 0.0
        $region84: #{tpu_custom_call.1} parent=59 // pred_fallthru
          _
        %v595 = vld [vmem:[%s556] sm:$0xff]
        %v596 = vld [vmem:[%s556 + $0x8] sm:$0xff]
        %v597 = vld [vmem:[%s556 + $0x10] sm:$0xff]
        %v598 = vld [vmem:[%s556 + $0x18] sm:$0xff]
        %v599 = vld [vmem:[%s556 + $0x20] sm:$0xff]
        %v600 = vld [vmem:[%s556 + $0x28] sm:$0xff]
        %v601 = vld [vmem:[%s556 + $0x30] sm:$0xff]
        %v602 = vld [vmem:[%s556 + $0x38] sm:$0xff]
        %v603 = vunpack.c.l.s8.bf16 %v595
        %v604 = vunpack.c.l.s8.bf16 %v596
        %v605 = vunpack.c.h.s8.bf16 %v595
        %v606 = vunpack.c.h.s8.bf16 %v596
        %v607 = vunpack.c.l.s8.bf16 %v597
        %v608 = vunpack.c.l.s8.bf16 %v598
        %v609 = vunpack.c.h.s8.bf16 %v597
        %v610 = vunpack.c.h.s8.bf16 %v598
        %v611 = vunpack.c.l.s8.bf16 %v599
        %v612 = vunpack.c.l.s8.bf16 %v600
        %v613 = vunpack.c.h.s8.bf16 %v599
        %v614 = vunpack.c.h.s8.bf16 %v600
        %v615 = vunpack.c.l.s8.bf16 %v601
        %v616 = vunpack.c.l.s8.bf16 %v602
        %v617 = vunpack.c.h.s8.bf16 %v601
        %v618 = vunpack.c.h.s8.bf16 %v602
        %v619 = vld [vmem:[%s563] sm:$0xf]
        %v620 = vld [vmem:[%s563 + $0x4] sm:$0xf]
        %v621 = vld [vmem:[%s563 + $0x8] sm:$0xf]
        %v622 = vld [vmem:[%s563 + $0xc] sm:$0xf]
        %v623 = vld [vmem:[%s563 + $0x10] sm:$0xf]
        %v624 = vld [vmem:[%s563 + $0x14] sm:$0xf]
        %v625 = vld [vmem:[%s563 + $0x18] sm:$0xf]
        %v626 = vld [vmem:[%s563 + $0x1c] sm:$0xf]
        %v627 = vld [vmem:[%s563 + $0x20] sm:$0xf]
        %v628 = vld [vmem:[%s563 + $0x24] sm:$0xf]
        %v629 = vld [vmem:[%s563 + $0x28] sm:$0xf]
        %v630 = vld [vmem:[%s563 + $0x2c] sm:$0xf]
        %v631 = vld [vmem:[%s563 + $0x30] sm:$0xf]
        %v632 = vld [vmem:[%s563 + $0x34] sm:$0xf]
        %v633 = vld [vmem:[%s563 + $0x38] sm:$0xf]
        %v634 = vld [vmem:[%s563 + $0x3c] sm:$0xf]
        %v635 = vld [vmem:[%s563 + $0x40] sm:$0xf]
        %v636 = vld [vmem:[%s563 + $0x44] sm:$0xf]
        %v637 = vld [vmem:[%s563 + $0x48] sm:$0xf]
        %v638 = vld [vmem:[%s563 + $0x4c] sm:$0xf]
        %v639 = vld [vmem:[%s563 + $0x50] sm:$0xf]
        %v640 = vld [vmem:[%s563 + $0x54] sm:$0xf]
        %v641 = vld [vmem:[%s563 + $0x58] sm:$0xf]
        %v642 = vld [vmem:[%s563 + $0x5c] sm:$0xf]
        %v643 = vld [vmem:[%s563 + $0x60] sm:$0xf]
        %v644 = vld [vmem:[%s563 + $0x64] sm:$0xf]
        %v645 = vld [vmem:[%s563 + $0x68] sm:$0xf]
        %v646 = vld [vmem:[%s563 + $0x6c] sm:$0xf]
        %v647 = vld [vmem:[%s563 + $0x70] sm:$0xf]
        %v648 = vld [vmem:[%s563 + $0x74] sm:$0xf]
        %v649 = vld [vmem:[%s563 + $0x78] sm:$0xf]
        %v650 = vld [vmem:[%s563 + $0x7c] sm:$0xf]
        %v651 = vld [vmem:[#allocation2] sm:$0xff]
        %v652 = vld [vmem:[#allocation2 + $0x8] sm:$0xff]
        %v653 = vld [vmem:[#allocation2 + $0x10] sm:$0xff]
        %v654 = vld [vmem:[#allocation2 + $0x18] sm:$0xff]
        %v655 = vld [vmem:[#allocation2 + $0x20] sm:$0xff]
        %v656 = vld [vmem:[#allocation2 + $0x28] sm:$0xff]
        %v657 = vld [vmem:[#allocation2 + $0x30] sm:$0xff]
        %v658 = vld [vmem:[#allocation2 + $0x38] sm:$0xff]
        %v659 = vld [vmem:[#allocation2 + $0x40] sm:$0xff]
        %v660 = vld [vmem:[#allocation2 + $0x48] sm:$0xff]
        %v661 = vld [vmem:[#allocation2 + $0x50] sm:$0xff]
        %v662 = vld [vmem:[#allocation2 + $0x58] sm:$0xff]
        %v663 = vld [vmem:[#allocation2 + $0x60] sm:$0xff]
        %v664 = vld [vmem:[#allocation2 + $0x68] sm:$0xff]
        %v665 = vld [vmem:[#allocation2 + $0x70] sm:$0xff]
        %v666 = vld [vmem:[#allocation2 + $0x78] sm:$0xff]
        %v699 = vunpack.c.l.b16 %v619
        %v700 = vunpack.c.l.b16 %v620
        %v701 = vunpack.c.l.b16 %v621
        %v702 = vunpack.c.l.b16 %v622
        %v703 = vunpack.c.l.b16 %v623
        %v704 = vunpack.c.l.b16 %v624
        %v705 = vunpack.c.l.b16 %v625
        %v706 = vunpack.c.l.b16 %v626
        %v707 = vunpack.c.l.b16 %v627
        %v708 = vunpack.c.l.b16 %v628
        %v709 = vunpack.c.l.b16 %v629
        %v710 = vunpack.c.l.b16 %v630
        %v711 = vunpack.c.l.b16 %v631
        %v712 = vunpack.c.l.b16 %v632
        %v713 = vunpack.c.l.b16 %v633
        %v714 = vunpack.c.l.b16 %v634
        %v715 = vunpack.c.l.b16 %v635
        %v716 = vunpack.c.l.b16 %v636
        %v717 = vunpack.c.l.b16 %v637
        %v718 = vunpack.c.l.b16 %v638
        %v719 = vunpack.c.l.b16 %v639
        %v720 = vunpack.c.l.b16 %v640
        %v721 = vunpack.c.l.b16 %v641
        %v722 = vunpack.c.l.b16 %v642
        %v723 = vunpack.c.l.b16 %v643
        %v724 = vunpack.c.l.b16 %v644
        %v725 = vunpack.c.l.b16 %v645
        %v726 = vunpack.c.l.b16 %v646
        %v727 = vunpack.c.l.b16 %v647
        %v728 = vunpack.c.l.b16 %v648
        %v729 = vunpack.c.l.b16 %v649
        %v730 = vunpack.c.l.b16 %v650
        %v731 = vpack.c.b16 %v700, %v699
        %v732 = vpack.c.b16 %v702, %v701
        %v733 = vpack.c.b16 %v704, %v703
        %v734 = vpack.c.b16 %v706, %v705
        %v735 = vpack.c.b16 %v708, %v707
        %v736 = vpack.c.b16 %v710, %v709
        %v737 = vpack.c.b16 %v712, %v711
        %v738 = vpack.c.b16 %v714, %v713
        %v739 = vpack.c.b16 %v716, %v715
        %v740 = vpack.c.b16 %v718, %v717
        %v741 = vpack.c.b16 %v720, %v719
        %v742 = vpack.c.b16 %v722, %v721
        %v743 = vpack.c.b16 %v724, %v723
        %v744 = vpack.c.b16 %v726, %v725
        %v745 = vpack.c.b16 %v728, %v727
        %v746 = vpack.c.b16 %v730, %v729
        %763 = vmatprep.subr.bf16.mxu0 0
        %764 = vmatpush1.bf16.msra.mxu0 %v738
        %765 = vmatprep.subr.bf16.mxu0 0
        %766 = vmatpush1.bf16.msra.mxu0 %v737
        %767 = vmatprep.subr.bf16.mxu0 0
        %768 = vmatpush1.bf16.msra.mxu0 %v736
        %769 = vmatprep.subr.bf16.mxu0 0
        %770 = vmatpush1.bf16.msra.mxu0 %v735
        %771 = vmatprep.subr.bf16.mxu0 0
        %772 = vmatpush1.bf16.msra.mxu0 %v734
        %773 = vmatprep.subr.bf16.mxu0 0
        %774 = vmatpush1.bf16.msra.mxu0 %v733
        %775 = vmatprep.subr.bf16.mxu0 0
        %776 = vmatpush1.bf16.msra.mxu0 %v732
        %777 = vmatprep.subr.bf16.mxu0 0
        %778 = vmatpush1.bf16.msra.mxu0 %v731
        %779 = vmatprep.subr.bf16.mxu0 0
        %780 = vmatpush2.bf16.msra.mxu0 %v746
        %781 = vmatprep.subr.bf16.mxu0 0
        %782 = vmatpush2.bf16.msra.mxu0 %v745
        %783 = vmatprep.subr.bf16.mxu0 0
        %784 = vmatpush2.bf16.msra.mxu0 %v744
        %785 = vmatprep.subr.bf16.mxu0 0
        %786 = vmatpush2.bf16.msra.mxu0 %v743
        %787 = vmatprep.subr.bf16.mxu0 0
        %788 = vmatpush2.bf16.msra.mxu0 %v742
        %789 = vmatprep.subr.bf16.mxu0 0
        %790 = vmatpush2.bf16.msra.mxu0 %v741
        %791 = vmatprep.subr.bf16.mxu0 0
        %792 = vmatpush2.bf16.msra.mxu0 %v740
        %793 = vmatprep.subr.bf16.mxu0 0
        %794 = vmatpush2.bf16.msra.mxu0 %v739
        %795 = vmatprep.mubr.bf16.mxu0 %v604
        %796 = vmatmul.mubr.bf16.gmra.mxu0 %v603
        %v797 = vpop.f32.mrf.mxu0
        %v798 = vadd.f32 0.0, %v797
        %v799 = vpop.f32.mrf.mxu0
        %v800 = vpop.f32.mrf.mxu0
        %v801 = vadd.f32 0.0, %v800
        %v802 = vpop.f32.mrf.mxu0
        %803 = vmatprep.mubr.bf16.mxu0 %v606
        %804 = vmatmul.mubr.bf16.gmra.mxu0 %v605
        %v805 = vpop.f32.mrf.mxu0
        %v806 = vadd.f32 0.0, %v805
        %v807 = vpop.f32.mrf.mxu0
        %v808 = vpop.f32.mrf.mxu0
        %v809 = vadd.f32 0.0, %v808
        %v810 = vpop.f32.mrf.mxu0
        %811 = vmatprep.mubr.bf16.mxu0 %v608
        %812 = vmatmul.mubr.bf16.gmra.mxu0 %v607
        %v813 = vpop.f32.mrf.mxu0
        %v814 = vadd.f32 0.0, %v813
        %v815 = vpop.f32.mrf.mxu0
        %v816 = vpop.f32.mrf.mxu0
        %v817 = vadd.f32 0.0, %v816
        %v818 = vpop.f32.mrf.mxu0
        %819 = vmatprep.mubr.bf16.mxu0 %v610
        %820 = vmatmul.mubr.bf16.gmra.mxu0 %v609
        %v821 = vpop.f32.mrf.mxu0
        %v822 = vadd.f32 0.0, %v821
        %v823 = vpop.f32.mrf.mxu0
        %v824 = vpop.f32.mrf.mxu0
        %v825 = vadd.f32 0.0, %v824
        %v826 = vpop.f32.mrf.mxu0
        %827 = vmatprep.mubr.bf16.mxu0 %v612
        %828 = vmatmul.mubr.bf16.gmra.mxu0 %v611
        %v829 = vpop.f32.mrf.mxu0
        %v830 = vadd.f32 0.0, %v829
        %v831 = vpop.f32.mrf.mxu0
        %v832 = vpop.f32.mrf.mxu0
        %v833 = vadd.f32 0.0, %v832
        %v834 = vpop.f32.mrf.mxu0
        %835 = vmatprep.mubr.bf16.mxu0 %v614
        %836 = vmatmul.mubr.bf16.gmra.mxu0 %v613
        %v837 = vpop.f32.mrf.mxu0
        %v838 = vadd.f32 0.0, %v837
        %v839 = vpop.f32.mrf.mxu0
        %v840 = vpop.f32.mrf.mxu0
        %v841 = vadd.f32 0.0, %v840
        %v842 = vpop.f32.mrf.mxu0
        %843 = vmatprep.mubr.bf16.mxu0 %v616
        %844 = vmatmul.mubr.bf16.gmra.mxu0 %v615
        %v845 = vpop.f32.mrf.mxu0
        %v846 = vadd.f32 0.0, %v845
        %v847 = vpop.f32.mrf.mxu0
        %v848 = vpop.f32.mrf.mxu0
        %v849 = vadd.f32 0.0, %v848
        %v850 = vpop.f32.mrf.mxu0
        %851 = vmatprep.mubr.bf16.mxu0 %v618
        %852 = vmatmul.mubr.bf16.gmra.mxu0 %v617
        %v853 = vpop.f32.mrf.mxu0
        %v854 = vadd.f32 0.0, %v853
        %v855 = vpop.f32.mrf.mxu0
        %v856 = vpop.f32.mrf.mxu0
        %v857 = vadd.f32 0.0, %v856
        %v858 = vpop.f32.mrf.mxu0
        %859 = vdwg.mxu0
        %v860 = vadd.f32 %v651, %v798
        %v861 = vadd.f32 %v652, %v801
        %v862 = vadd.f32 %v653, %v806
        %v863 = vadd.f32 %v654, %v809
        %v864 = vadd.f32 %v655, %v814
        %v865 = vadd.f32 %v656, %v817
        %v866 = vadd.f32 %v657, %v822
        %v867 = vadd.f32 %v658, %v825
        %v868 = vadd.f32 %v659, %v830
        %v869 = vadd.f32 %v660, %v833
        %v870 = vadd.f32 %v661, %v838
        %v871 = vadd.f32 %v662, %v841
        %v872 = vadd.f32 %v663, %v846
        %v873 = vadd.f32 %v664, %v849
        %v874 = vadd.f32 %v665, %v854
        %v875 = vadd.f32 %v666, %v857
        %876 = vst [vmem:[#allocation2] sm:$0xff] %v860
        %877 = vst [vmem:[#allocation2 + $0x8] sm:$0xff] %v861
        %878 = vst [vmem:[#allocation2 + $0x10] sm:$0xff] %v862
        %879 = vst [vmem:[#allocation2 + $0x18] sm:$0xff] %v863
        %880 = vst [vmem:[#allocation2 + $0x20] sm:$0xff] %v864
        %881 = vst [vmem:[#allocation2 + $0x28] sm:$0xff] %v865
        %882 = vst [vmem:[#allocation2 + $0x30] sm:$0xff] %v866
        %883 = vst [vmem:[#allocation2 + $0x38] sm:$0xff] %v867
        %884 = vst [vmem:[#allocation2 + $0x40] sm:$0xff] %v868
        %885 = vst [vmem:[#allocation2 + $0x48] sm:$0xff] %v869
        %886 = vst [vmem:[#allocation2 + $0x50] sm:$0xff] %v870
        %887 = vst [vmem:[#allocation2 + $0x58] sm:$0xff] %v871
        %888 = vst [vmem:[#allocation2 + $0x60] sm:$0xff] %v872
        %889 = vst [vmem:[#allocation2 + $0x68] sm:$0xff] %v873
        %890 = vst [vmem:[#allocation2 + $0x70] sm:$0xff] %v874
        %891 = vst [vmem:[#allocation2 + $0x78] sm:$0xff] %v875
        // Predicated region
        $region85: #{tpu_custom_call.1} parent=59 // pred_check
          %p892 = pneg %p575
        $region86: #{tpu_custom_call.1} parent=59 // pred_check_branch
          %894 = sbr.rel (%p892) target = $region88
        $region87: #{tpu_custom_call.1} parent=59 // pred_region
          %v895 = vld [vmem:[#allocation2] sm:$0xff]
          %v896 = vld [vmem:[#allocation2 + $0x8] sm:$0xff]
          %v897 = vld [vmem:[#allocation2 + $0x10] sm:$0xff]
          %v898 = vld [vmem:[#allocation2 + $0x18] sm:$0xff]
          %v899 = vld [vmem:[#allocation2 + $0x20] sm:$0xff]
          %v900 = vld [vmem:[#allocation2 + $0x28] sm:$0xff]
          %v901 = vld [vmem:[#allocation2 + $0x30] sm:$0xff]
          %v902 = vld [vmem:[#allocation2 + $0x38] sm:$0xff]
          %v903 = vld [vmem:[#allocation2 + $0x40] sm:$0xff]
          %v904 = vld [vmem:[#allocation2 + $0x48] sm:$0xff]
          %v905 = vld [vmem:[#allocation2 + $0x50] sm:$0xff]
          %v906 = vld [vmem:[#allocation2 + $0x58] sm:$0xff]
          %v907 = vld [vmem:[#allocation2 + $0x60] sm:$0xff]
          %v908 = vld [vmem:[#allocation2 + $0x68] sm:$0xff]
          %v909 = vld [vmem:[#allocation2 + $0x70] sm:$0xff]
          %v910 = vld [vmem:[#allocation2 + $0x78] sm:$0xff]
          %v911 = vld [vmem:[%s570] sm:$0xff]
          %v912 = vld [vmem:[%s570 + $0x8] sm:$0xff]
          %v913 = vld [vmem:[%s570 + $0x10] sm:$0xff]
          %v914 = vld [vmem:[%s570 + $0x18] sm:$0xff]
          %v915 = vld [vmem:[%s570 + $0x20] sm:$0xff]
          %v916 = vld [vmem:[%s570 + $0x28] sm:$0xff]
          %v917 = vld [vmem:[%s570 + $0x30] sm:$0xff]
          %v918 = vld [vmem:[%s570 + $0x38] sm:$0xff]
          %v919 = vld [vmem:[%s570 + $0x40] sm:$0xff]
          %v920 = vld [vmem:[%s570 + $0x48] sm:$0xff]
          %v921 = vld [vmem:[%s570 + $0x50] sm:$0xff]
          %v922 = vld [vmem:[%s570 + $0x58] sm:$0xff]
          %v923 = vld [vmem:[%s570 + $0x60] sm:$0xff]
          %v924 = vld [vmem:[%s570 + $0x68] sm:$0xff]
          %v925 = vld [vmem:[%s570 + $0x70] sm:$0xff]
          %v926 = vld [vmem:[%s570 + $0x78] sm:$0xff]
          %928 = vset.pattern.permute.xlu0 0
          %929 = vperm.xlu0 %928, %v911
          %v930 = vpop.permute.xlu0 %929
          %933 = vset.pattern.permute.xlu0 0
          %934 = vperm.xlu0 %933, %v912
          %v935 = vpop.permute.xlu0 %934
          %938 = vset.pattern.permute.xlu0 0
          %939 = vperm.xlu0 %938, %v913
          %v940 = vpop.permute.xlu0 %939
          %943 = vset.pattern.permute.xlu0 0
          %944 = vperm.xlu0 %943, %v914
          %v945 = vpop.permute.xlu0 %944
          %948 = vset.pattern.permute.xlu0 0
          %949 = vperm.xlu0 %948, %v915
          %v950 = vpop.permute.xlu0 %949
          %953 = vset.pattern.permute.xlu0 0
          %954 = vperm.xlu0 %953, %v916
          %v955 = vpop.permute.xlu0 %954
          %958 = vset.pattern.permute.xlu0 0
          %959 = vperm.xlu0 %958, %v917
          %v960 = vpop.permute.xlu0 %959
          %963 = vset.pattern.permute.xlu0 0
          %964 = vperm.xlu0 %963, %v918
          %v965 = vpop.permute.xlu0 %964
          %968 = vset.pattern.permute.xlu0 0
          %969 = vperm.xlu0 %968, %v919
          %v970 = vpop.permute.xlu0 %969
          %973 = vset.pattern.permute.xlu0 0
          %974 = vperm.xlu0 %973, %v920
          %v975 = vpop.permute.xlu0 %974
          %978 = vset.pattern.permute.xlu0 0
          %979 = vperm.xlu0 %978, %v921
          %v980 = vpop.permute.xlu0 %979
          %983 = vset.pattern.permute.xlu0 0
          %984 = vperm.xlu0 %983, %v922
          %v985 = vpop.permute.xlu0 %984
          %988 = vset.pattern.permute.xlu0 0
          %989 = vperm.xlu0 %988, %v923
          %v990 = vpop.permute.xlu0 %989
          %993 = vset.pattern.permute.xlu0 0
          %994 = vperm.xlu0 %993, %v924
          %v995 = vpop.permute.xlu0 %994
          %998 = vset.pattern.permute.xlu0 0
          %999 = vperm.xlu0 %998, %v925
          %v1000 = vpop.permute.xlu0 %999
          %1003 = vset.pattern.permute.xlu0 0
          %1004 = vperm.xlu0 %1003, %v926
          %v1005 = vpop.permute.xlu0 %1004
          %v1007 = vmul.f32 %v895, %v930
          %v1008 = vmul.f32 %v896, %v935
          %v1009 = vmul.f32 %v897, %v940
          %v1010 = vmul.f32 %v898, %v945
          %v1011 = vmul.f32 %v899, %v950
          %v1012 = vmul.f32 %v900, %v955
          %v1013 = vmul.f32 %v901, %v960
          %v1014 = vmul.f32 %v902, %v965
          %v1015 = vmul.f32 %v903, %v970
          %v1016 = vmul.f32 %v904, %v975
          %v1017 = vmul.f32 %v905, %v980
          %v1018 = vmul.f32 %v906, %v985
          %v1019 = vmul.f32 %v907, %v990
          %v1020 = vmul.f32 %v908, %v995
          %v1021 = vmul.f32 %v909, %v1000
          %v1022 = vmul.f32 %v910, %v1005
          %v1023 = vpack.c.bf16 %v1008, %v1007
          %v1024 = vpack.c.bf16 %v1010, %v1009
          %v1025 = vpack.c.bf16 %v1012, %v1011
          %v1026 = vpack.c.bf16 %v1014, %v1013
          %v1027 = vpack.c.bf16 %v1016, %v1015
          %v1028 = vpack.c.bf16 %v1018, %v1017
          %v1029 = vpack.c.bf16 %v1020, %v1019
          %v1030 = vpack.c.bf16 %v1022, %v1021
          %v1031 = vld [vmem:[#allocation6] sm:$0xf]
          %v1032 = vld [vmem:[#allocation6 + $0x4] sm:$0xf]
          %v1033 = vld [vmem:[#allocation6 + $0x8] sm:$0xf]
          %v1034 = vld [vmem:[#allocation6 + $0xc] sm:$0xf]
          %v1035 = vld [vmem:[#allocation6 + $0x10] sm:$0xf]
          %v1036 = vld [vmem:[#allocation6 + $0x14] sm:$0xf]
          %v1037 = vld [vmem:[#allocation6 + $0x18] sm:$0xf]
          %v1038 = vld [vmem:[#allocation6 + $0x1c] sm:$0xf]
          %v1039 = vld [vmem:[#allocation6 + $0x20] sm:$0xf]
          %v1040 = vld [vmem:[#allocation6 + $0x24] sm:$0xf]
          %v1041 = vld [vmem:[#allocation6 + $0x28] sm:$0xf]
          %v1042 = vld [vmem:[#allocation6 + $0x2c] sm:$0xf]
          %v1043 = vld [vmem:[#allocation6 + $0x30] sm:$0xf]
          %v1044 = vld [vmem:[#allocation6 + $0x34] sm:$0xf]
          %v1045 = vld [vmem:[#allocation6 + $0x38] sm:$0xf]
          %v1046 = vld [vmem:[#allocation6 + $0x3c] sm:$0xf]
          %v1047 = vld [vmem:[%s467] sm:$0xf]
          %v1048 = vld [vmem:[%s467 + $0x4] sm:$0xf]
          %v1049 = vld [vmem:[%s467 + $0x8] sm:$0xf]
          %v1050 = vld [vmem:[%s467 + $0xc] sm:$0xf]
          %v1051 = vld [vmem:[%s467 + $0x10] sm:$0xf]
          %v1052 = vld [vmem:[%s467 + $0x14] sm:$0xf]
          %v1053 = vld [vmem:[%s467 + $0x18] sm:$0xf]
          %v1054 = vld [vmem:[%s467 + $0x1c] sm:$0xf]
          %v1055 = vld [vmem:[%s467 + $0x20] sm:$0xf]
          %v1056 = vld [vmem:[%s467 + $0x24] sm:$0xf]
          %v1057 = vld [vmem:[%s467 + $0x28] sm:$0xf]
          %v1058 = vld [vmem:[%s467 + $0x2c] sm:$0xf]
          %v1059 = vld [vmem:[%s467 + $0x30] sm:$0xf]
          %v1060 = vld [vmem:[%s467 + $0x34] sm:$0xf]
          %v1061 = vld [vmem:[%s467 + $0x38] sm:$0xf]
          %v1062 = vld [vmem:[%s467 + $0x3c] sm:$0xf]
          %v1063 = vld [vmem:[#allocation8] sm:$0xf]
          %v1064 = vld [vmem:[#allocation8 + $0x4] sm:$0xf]
          %v1065 = vld [vmem:[#allocation8 + $0x8] sm:$0xf]
          %v1066 = vld [vmem:[#allocation8 + $0xc] sm:$0xf]
          %v1067 = vld [vmem:[#allocation8 + $0x10] sm:$0xf]
          %v1068 = vld [vmem:[#allocation8 + $0x14] sm:$0xf]
          %v1069 = vld [vmem:[#allocation8 + $0x18] sm:$0xf]
          %v1070 = vld [vmem:[#allocation8 + $0x1c] sm:$0xf]
          %v1071 = vld [vmem:[#allocation8 + $0x20] sm:$0xf]
          %v1072 = vld [vmem:[#allocation8 + $0x24] sm:$0xf]
          %v1073 = vld [vmem:[#allocation8 + $0x28] sm:$0xf]
          %v1074 = vld [vmem:[#allocation8 + $0x2c] sm:$0xf]
          %v1075 = vld [vmem:[#allocation8 + $0x30] sm:$0xf]
          %v1076 = vld [vmem:[#allocation8 + $0x34] sm:$0xf]
          %v1077 = vld [vmem:[#allocation8 + $0x38] sm:$0xf]
          %v1078 = vld [vmem:[#allocation8 + $0x3c] sm:$0xf]
          %v1095 = vunpack.c.l.b16 %v1047
          %v1096 = vunpack.c.l.b16 %v1048
          %v1097 = vunpack.c.l.b16 %v1049
          %v1098 = vunpack.c.l.b16 %v1050
          %v1099 = vunpack.c.l.b16 %v1051
          %v1100 = vunpack.c.l.b16 %v1052
          %v1101 = vunpack.c.l.b16 %v1053
          %v1102 = vunpack.c.l.b16 %v1054
          %v1103 = vunpack.c.l.b16 %v1055
          %v1104 = vunpack.c.l.b16 %v1056
          %v1105 = vunpack.c.l.b16 %v1057
          %v1106 = vunpack.c.l.b16 %v1058
          %v1107 = vunpack.c.l.b16 %v1059
          %v1108 = vunpack.c.l.b16 %v1060
          %v1109 = vunpack.c.l.b16 %v1061
          %v1110 = vunpack.c.l.b16 %v1062
          %v1111 = vpack.c.b16 %v1096, %v1095
          %v1112 = vpack.c.b16 %v1098, %v1097
          %v1113 = vpack.c.b16 %v1100, %v1099
          %v1114 = vpack.c.b16 %v1102, %v1101
          %v1115 = vpack.c.b16 %v1104, %v1103
          %v1116 = vpack.c.b16 %v1106, %v1105
          %v1117 = vpack.c.b16 %v1108, %v1107
          %v1118 = vpack.c.b16 %v1110, %v1109
          %v1143 = vunpack.c.l.b16 %v1063
          %v1144 = vunpack.c.l.b16 %v1064
          %v1145 = vunpack.c.l.b16 %v1065
          %v1146 = vunpack.c.l.b16 %v1066
          %v1147 = vunpack.c.l.b16 %v1067
          %v1148 = vunpack.c.l.b16 %v1068
          %v1149 = vunpack.c.l.b16 %v1069
          %v1150 = vunpack.c.l.b16 %v1070
          %v1151 = vunpack.c.l.b16 %v1071
          %v1152 = vunpack.c.l.b16 %v1072
          %v1153 = vunpack.c.l.b16 %v1073
          %v1154 = vunpack.c.l.b16 %v1074
          %v1155 = vunpack.c.l.b16 %v1075
          %v1156 = vunpack.c.l.b16 %v1076
          %v1157 = vunpack.c.l.b16 %v1077
          %v1158 = vunpack.c.l.b16 %v1078
          %v1159 = vpack.c.b16 %v1144, %v1143
          %v1160 = vpack.c.b16 %v1146, %v1145
          %v1161 = vpack.c.b16 %v1148, %v1147
          %v1162 = vpack.c.b16 %v1150, %v1149
          %v1163 = vpack.c.b16 %v1152, %v1151
          %v1164 = vpack.c.b16 %v1154, %v1153
          %v1165 = vpack.c.b16 %v1156, %v1155
          %v1166 = vpack.c.b16 %v1158, %v1157
          %1175 = vmatprep.subr.bf16.mxu0 0
          %1176 = vmatpush1.bf16.msra.mxu0 %v1166
          %1177 = vmatprep.subr.bf16.mxu0 0
          %1178 = vmatpush1.bf16.msra.mxu0 %v1165
          %1179 = vmatprep.subr.bf16.mxu0 0
          %1180 = vmatpush1.bf16.msra.mxu0 %v1164
          %1181 = vmatprep.subr.bf16.mxu0 0
          %1182 = vmatpush1.bf16.msra.mxu0 %v1163
          %1183 = vmatprep.subr.bf16.mxu0 0
          %1184 = vmatpush1.bf16.msra.mxu0 %v1162
          %1185 = vmatprep.subr.bf16.mxu0 0
          %1186 = vmatpush1.bf16.msra.mxu0 %v1161
          %1187 = vmatprep.subr.bf16.mxu0 0
          %1188 = vmatpush1.bf16.msra.mxu0 %v1160
          %1189 = vmatprep.subr.bf16.mxu0 0
          %1190 = vmatpush1.bf16.msra.mxu0 %v1159
          %1191 = vmatprep.subr.bf16.mxu0 0
          %1192 = vmatpush2.bf16.msra.mxu0 0
          %1193 = vmatprep.subr.bf16.mxu0 0
          %1194 = vmatpush2.bf16.msra.mxu0 0
          %1195 = vmatprep.subr.bf16.mxu0 0
          %1196 = vmatpush2.bf16.msra.mxu0 0
          %1197 = vmatprep.subr.bf16.mxu0 0
          %1198 = vmatpush2.bf16.msra.mxu0 0
          %1199 = vmatprep.subr.bf16.mxu0 0
          %1200 = vmatpush2.bf16.msra.mxu0 0
          %1201 = vmatprep.subr.bf16.mxu0 0
          %1202 = vmatpush2.bf16.msra.mxu0 0
          %1203 = vmatprep.subr.bf16.mxu0 0
          %1204 = vmatpush2.bf16.msra.mxu0 0
          %1205 = vmatprep.subr.bf16.mxu0 0
          %1206 = vmatpush2.bf16.msra.mxu0 0
          %1207 = vmatprep.mubr.bf16.mxu0 0
          %1208 = vmatmul.mubr.bf16.gmra.mxu0 %v1111
          %v1209 = vpop.f32.mrf.mxu0
          %v1210 = vadd.f32 0.0, %v1209
          %v1211 = vpop.f32.mrf.mxu0
          %v1212 = vpop.f32.mrf.mxu0
          %v1213 = vadd.f32 0.0, %v1212
          %v1214 = vpop.f32.mrf.mxu0
          %1215 = vmatprep.mubr.bf16.mxu0 0
          %1216 = vmatmul.mubr.bf16.gmra.mxu0 %v1112
          %v1217 = vpop.f32.mrf.mxu0
          %v1218 = vadd.f32 0.0, %v1217
          %v1219 = vpop.f32.mrf.mxu0
          %v1220 = vpop.f32.mrf.mxu0
          %v1221 = vadd.f32 0.0, %v1220
          %v1222 = vpop.f32.mrf.mxu0
          %1223 = vmatprep.mubr.bf16.mxu0 0
          %1224 = vmatmul.mubr.bf16.gmra.mxu0 %v1113
          %v1225 = vpop.f32.mrf.mxu0
          %v1226 = vadd.f32 0.0, %v1225
          %v1227 = vpop.f32.mrf.mxu0
          %v1228 = vpop.f32.mrf.mxu0
          %v1229 = vadd.f32 0.0, %v1228
          %v1230 = vpop.f32.mrf.mxu0
          %1231 = vmatprep.mubr.bf16.mxu0 0
          %1232 = vmatmul.mubr.bf16.gmra.mxu0 %v1114
          %v1233 = vpop.f32.mrf.mxu0
          %v1234 = vadd.f32 0.0, %v1233
          %v1235 = vpop.f32.mrf.mxu0
          %v1236 = vpop.f32.mrf.mxu0
          %v1237 = vadd.f32 0.0, %v1236
          %v1238 = vpop.f32.mrf.mxu0
          %1239 = vmatprep.mubr.bf16.mxu0 0
          %1240 = vmatmul.mubr.bf16.gmra.mxu0 %v1115
          %v1241 = vpop.f32.mrf.mxu0
          %v1242 = vadd.f32 0.0, %v1241
          %v1243 = vpop.f32.mrf.mxu0
          %v1244 = vpop.f32.mrf.mxu0
          %v1245 = vadd.f32 0.0, %v1244
          %v1246 = vpop.f32.mrf.mxu0
          %1247 = vmatprep.mubr.bf16.mxu0 0
          %1248 = vmatmul.mubr.bf16.gmra.mxu0 %v1116
          %v1249 = vpop.f32.mrf.mxu0
          %v1250 = vadd.f32 0.0, %v1249
          %v1251 = vpop.f32.mrf.mxu0
          %v1252 = vpop.f32.mrf.mxu0
          %v1253 = vadd.f32 0.0, %v1252
          %v1254 = vpop.f32.mrf.mxu0
          %1255 = vmatprep.mubr.bf16.mxu0 0
          %1256 = vmatmul.mubr.bf16.gmra.mxu0 %v1117
          %v1257 = vpop.f32.mrf.mxu0
          %v1258 = vadd.f32 0.0, %v1257
          %v1259 = vpop.f32.mrf.mxu0
          %v1260 = vpop.f32.mrf.mxu0
          %v1261 = vadd.f32 0.0, %v1260
          %v1262 = vpop.f32.mrf.mxu0
          %1263 = vmatprep.mubr.bf16.mxu0 0
          %1264 = vmatmul.mubr.bf16.gmra.mxu0 %v1118
          %v1265 = vpop.f32.mrf.mxu0
          %v1266 = vadd.f32 0.0, %v1265
          %v1267 = vpop.f32.mrf.mxu0
          %v1268 = vpop.f32.mrf.mxu0
          %v1269 = vadd.f32 0.0, %v1268
          %v1270 = vpop.f32.mrf.mxu0
          %1271 = vdwg.mxu0
          %v1288 = vunpack.c.l.b16 %v1031
          %v1289 = vunpack.c.l.b16 %v1032
          %v1290 = vunpack.c.l.b16 %v1033
          %v1291 = vunpack.c.l.b16 %v1034
          %v1292 = vunpack.c.l.b16 %v1035
          %v1293 = vunpack.c.l.b16 %v1036
          %v1294 = vunpack.c.l.b16 %v1037
          %v1295 = vunpack.c.l.b16 %v1038
          %v1296 = vunpack.c.l.b16 %v1039
          %v1297 = vunpack.c.l.b16 %v1040
          %v1298 = vunpack.c.l.b16 %v1041
          %v1299 = vunpack.c.l.b16 %v1042
          %v1300 = vunpack.c.l.b16 %v1043
          %v1301 = vunpack.c.l.b16 %v1044
          %v1302 = vunpack.c.l.b16 %v1045
          %v1303 = vunpack.c.l.b16 %v1046
          %v1304 = vpack.c.b16 %v1289, %v1288
          %v1305 = vpack.c.b16 %v1291, %v1290
          %v1306 = vpack.c.b16 %v1293, %v1292
          %v1307 = vpack.c.b16 %v1295, %v1294
          %v1308 = vpack.c.b16 %v1297, %v1296
          %v1309 = vpack.c.b16 %v1299, %v1298
          %v1310 = vpack.c.b16 %v1301, %v1300
          %v1311 = vpack.c.b16 %v1303, %v1302
          %1320 = vmatprep.subr.bf16.mxu0 0
          %1321 = vmatpush1.bf16.msra.mxu0 %v1311
          %1322 = vmatprep.subr.bf16.mxu0 0
          %1323 = vmatpush1.bf16.msra.mxu0 %v1310
          %1324 = vmatprep.subr.bf16.mxu0 0
          %1325 = vmatpush1.bf16.msra.mxu0 %v1309
          %1326 = vmatprep.subr.bf16.mxu0 0
          %1327 = vmatpush1.bf16.msra.mxu0 %v1308
          %1328 = vmatprep.subr.bf16.mxu0 0
          %1329 = vmatpush1.bf16.msra.mxu0 %v1307
          %1330 = vmatprep.subr.bf16.mxu0 0
          %1331 = vmatpush1.bf16.msra.mxu0 %v1306
          %1332 = vmatprep.subr.bf16.mxu0 0
          %1333 = vmatpush1.bf16.msra.mxu0 %v1305
          %1334 = vmatprep.subr.bf16.mxu0 0
          %1335 = vmatpush1.bf16.msra.mxu0 %v1304
          %1336 = vmatprep.subr.bf16.mxu0 0
          %1337 = vmatpush2.bf16.msra.mxu0 0
          %1338 = vmatprep.subr.bf16.mxu0 0
          %1339 = vmatpush2.bf16.msra.mxu0 0
          %1340 = vmatprep.subr.bf16.mxu0 0
          %1341 = vmatpush2.bf16.msra.mxu0 0
          %1342 = vmatprep.subr.bf16.mxu0 0
          %1343 = vmatpush2.bf16.msra.mxu0 0
          %1344 = vmatprep.subr.bf16.mxu0 0
          %1345 = vmatpush2.bf16.msra.mxu0 0
          %1346 = vmatprep.subr.bf16.mxu0 0
          %1347 = vmatpush2.bf16.msra.mxu0 0
          %1348 = vmatprep.subr.bf16.mxu0 0
          %1349 = vmatpush2.bf16.msra.mxu0 0
          %1350 = vmatprep.subr.bf16.mxu0 0
          %1351 = vmatpush2.bf16.msra.mxu0 0
          %1352 = vmatprep.mubr.bf16.mxu0 0
          %1353 = vmatmul.mubr.bf16.gmra.mxu0 %v1023
          %v1354 = vpop.f32.mrf.mxu0
          %v1355 = vadd.f32 %v1210, %v1354
          %v1356 = vpop.f32.mrf.mxu0
          %v1357 = vpop.f32.mrf.mxu0
          %v1358 = vadd.f32 %v1213, %v1357
          %v1359 = vpop.f32.mrf.mxu0
          %1360 = vmatprep.mubr.bf16.mxu0 0
          %1361 = vmatmul.mubr.bf16.gmra.mxu0 %v1024
          %v1362 = vpop.f32.mrf.mxu0
          %v1363 = vadd.f32 %v1218, %v1362
          %v1364 = vpop.f32.mrf.mxu0
          %v1365 = vpop.f32.mrf.mxu0
          %v1366 = vadd.f32 %v1221, %v1365
          %v1367 = vpop.f32.mrf.mxu0
          %1368 = vmatprep.mubr.bf16.mxu0 0
          %1369 = vmatmul.mubr.bf16.gmra.mxu0 %v1025
          %v1370 = vpop.f32.mrf.mxu0
          %v1371 = vadd.f32 %v1226, %v1370
          %v1372 = vpop.f32.mrf.mxu0
          %v1373 = vpop.f32.mrf.mxu0
          %v1374 = vadd.f32 %v1229, %v1373
          %v1375 = vpop.f32.mrf.mxu0
          %1376 = vmatprep.mubr.bf16.mxu0 0
          %1377 = vmatmul.mubr.bf16.gmra.mxu0 %v1026
          %v1378 = vpop.f32.mrf.mxu0
          %v1379 = vadd.f32 %v1234, %v1378
          %v1380 = vpop.f32.mrf.mxu0
          %v1381 = vpop.f32.mrf.mxu0
          %v1382 = vadd.f32 %v1237, %v1381
          %v1383 = vpop.f32.mrf.mxu0
          %1384 = vmatprep.mubr.bf16.mxu0 0
          %1385 = vmatmul.mubr.bf16.gmra.mxu0 %v1027
          %v1386 = vpop.f32.mrf.mxu0
          %v1387 = vadd.f32 %v1242, %v1386
          %v1388 = vpop.f32.mrf.mxu0
          %v1389 = vpop.f32.mrf.mxu0
          %v1390 = vadd.f32 %v1245, %v1389
          %v1391 = vpop.f32.mrf.mxu0
          %1392 = vmatprep.mubr.bf16.mxu0 0
          %1393 = vmatmul.mubr.bf16.gmra.mxu0 %v1028
          %v1394 = vpop.f32.mrf.mxu0
          %v1395 = vadd.f32 %v1250, %v1394
          %v1396 = vpop.f32.mrf.mxu0
          %v1397 = vpop.f32.mrf.mxu0
          %v1398 = vadd.f32 %v1253, %v1397
          %v1399 = vpop.f32.mrf.mxu0
          %1400 = vmatprep.mubr.bf16.mxu0 0
          %1401 = vmatmul.mubr.bf16.gmra.mxu0 %v1029
          %v1402 = vpop.f32.mrf.mxu0
          %v1403 = vadd.f32 %v1258, %v1402
          %v1404 = vpop.f32.mrf.mxu0
          %v1405 = vpop.f32.mrf.mxu0
          %v1406 = vadd.f32 %v1261, %v1405
          %v1407 = vpop.f32.mrf.mxu0
          %1408 = vmatprep.mubr.bf16.mxu0 0
          %1409 = vmatmul.mubr.bf16.gmra.mxu0 %v1030
          %v1410 = vpop.f32.mrf.mxu0
          %v1411 = vadd.f32 %v1266, %v1410
          %v1412 = vpop.f32.mrf.mxu0
          %v1413 = vpop.f32.mrf.mxu0
          %v1414 = vadd.f32 %v1269, %v1413
          %v1415 = vpop.f32.mrf.mxu0
          %1416 = vdwg.mxu0
          %v1417 = vld [vmem:[%s6] sm:$0x1]
          %v1419 = vlaneseq
          %v1420 = vshrl.u32 %v1419, 7
          %v1421 = vsub.s32 0, %v1420
          %v1422 = vrot.slane %v1417, %v1421
          %v1424 = vadd.f32 %v1355, %v1422
          %v1425 = vadd.f32 %v1358, %v1422
          %v1426 = vadd.f32 %v1363, %v1422
          %v1427 = vadd.f32 %v1366, %v1422
          %v1428 = vadd.f32 %v1371, %v1422
          %v1429 = vadd.f32 %v1374, %v1422
          %v1430 = vadd.f32 %v1379, %v1422
          %v1431 = vadd.f32 %v1382, %v1422
          %v1432 = vadd.f32 %v1387, %v1422
          %v1433 = vadd.f32 %v1390, %v1422
          %v1434 = vadd.f32 %v1395, %v1422
          %v1435 = vadd.f32 %v1398, %v1422
          %v1436 = vadd.f32 %v1403, %v1422
          %v1437 = vadd.f32 %v1406, %v1422
          %v1438 = vadd.f32 %v1411, %v1422
          %v1439 = vadd.f32 %v1414, %v1422
          %v1440 = vmax.f32 %v1424, 0.0
          %v1441 = vmax.f32 %v1425, 0.0
          %v1442 = vmax.f32 %v1426, 0.0
          %v1443 = vmax.f32 %v1427, 0.0
          %v1444 = vmax.f32 %v1428, 0.0
          %v1445 = vmax.f32 %v1429, 0.0
          %v1446 = vmax.f32 %v1430, 0.0
          %v1447 = vmax.f32 %v1431, 0.0
          %v1448 = vmax.f32 %v1432, 0.0
          %v1449 = vmax.f32 %v1433, 0.0
          %v1450 = vmax.f32 %v1434, 0.0
          %v1451 = vmax.f32 %v1435, 0.0
          %v1452 = vmax.f32 %v1436, 0.0
          %v1453 = vmax.f32 %v1437, 0.0
          %v1454 = vmax.f32 %v1438, 0.0
          %v1455 = vmax.f32 %v1439, 0.0
          %v1456 = vpack.c.bf16 %v1441, %v1440
          %v1457 = vpack.c.bf16 %v1443, %v1442
          %v1458 = vpack.c.bf16 %v1445, %v1444
          %v1459 = vpack.c.bf16 %v1447, %v1446
          %v1460 = vpack.c.bf16 %v1449, %v1448
          %v1461 = vpack.c.bf16 %v1451, %v1450
          %v1462 = vpack.c.bf16 %v1453, %v1452
          %v1463 = vpack.c.bf16 %v1455, %v1454
          %v1464 = vld [vmem:[#allocation9] sm:$0xf]
          %v1465 = vld [vmem:[#allocation9 + $0x4] sm:$0xf]
          %v1466 = vld [vmem:[#allocation9 + $0x8] sm:$0xf]
          %v1467 = vld [vmem:[#allocation9 + $0xc] sm:$0xf]
          %v1468 = vld [vmem:[#allocation9 + $0x10] sm:$0xf]
          %v1469 = vld [vmem:[#allocation9 + $0x14] sm:$0xf]
          %v1470 = vld [vmem:[#allocation9 + $0x18] sm:$0xf]
          %v1471 = vld [vmem:[#allocation9 + $0x1c] sm:$0xf]
          %v1472 = vld [vmem:[#allocation9 + $0x20] sm:$0xf]
          %v1473 = vld [vmem:[#allocation9 + $0x24] sm:$0xf]
          %v1474 = vld [vmem:[#allocation9 + $0x28] sm:$0xf]
          %v1475 = vld [vmem:[#allocation9 + $0x2c] sm:$0xf]
          %v1476 = vld [vmem:[#allocation9 + $0x30] sm:$0xf]
          %v1477 = vld [vmem:[#allocation9 + $0x34] sm:$0xf]
          %v1478 = vld [vmem:[#allocation9 + $0x38] sm:$0xf]
          %v1479 = vld [vmem:[#allocation9 + $0x3c] sm:$0xf]
          %v1496 = vunpack.c.l.b16 %v1464
          %v1497 = vunpack.c.l.b16 %v1465
          %v1498 = vunpack.c.l.b16 %v1466
          %v1499 = vunpack.c.l.b16 %v1467
          %v1500 = vunpack.c.l.b16 %v1468
          %v1501 = vunpack.c.l.b16 %v1469
          %v1502 = vunpack.c.l.b16 %v1470
          %v1503 = vunpack.c.l.b16 %v1471
          %v1504 = vunpack.c.l.b16 %v1472
          %v1505 = vunpack.c.l.b16 %v1473
          %v1506 = vunpack.c.l.b16 %v1474
          %v1507 = vunpack.c.l.b16 %v1475
          %v1508 = vunpack.c.l.b16 %v1476
          %v1509 = vunpack.c.l.b16 %v1477
          %v1510 = vunpack.c.l.b16 %v1478
          %v1511 = vunpack.c.l.b16 %v1479
          %v1512 = vpack.c.b16 %v1497, %v1496
          %v1513 = vpack.c.b16 %v1499, %v1498
          %v1514 = vpack.c.b16 %v1501, %v1500
          %v1515 = vpack.c.b16 %v1503, %v1502
          %v1516 = vpack.c.b16 %v1505, %v1504
          %v1517 = vpack.c.b16 %v1507, %v1506
          %v1518 = vpack.c.b16 %v1509, %v1508
          %v1519 = vpack.c.b16 %v1511, %v1510
          %1528 = vmatprep.subr.bf16.mxu0 0
          %1529 = vmatpush1.bf16.msra.mxu0 %v1519
          %1530 = vmatprep.subr.bf16.mxu0 0
          %1531 = vmatpush1.bf16.msra.mxu0 %v1518
          %1532 = vmatprep.subr.bf16.mxu0 0
          %1533 = vmatpush1.bf16.msra.mxu0 %v1517
          %1534 = vmatprep.subr.bf16.mxu0 0
          %1535 = vmatpush1.bf16.msra.mxu0 %v1516
          %1536 = vmatprep.subr.bf16.mxu0 0
          %1537 = vmatpush1.bf16.msra.mxu0 %v1515
          %1538 = vmatprep.subr.bf16.mxu0 0
          %1539 = vmatpush1.bf16.msra.mxu0 %v1514
          %1540 = vmatprep.subr.bf16.mxu0 0
          %1541 = vmatpush1.bf16.msra.mxu0 %v1513
          %1542 = vmatprep.subr.bf16.mxu0 0
          %1543 = vmatpush1.bf16.msra.mxu0 %v1512
          %1544 = vmatprep.subr.bf16.mxu0 0
          %1545 = vmatpush2.bf16.msra.mxu0 0
          %1546 = vmatprep.subr.bf16.mxu0 0
          %1547 = vmatpush2.bf16.msra.mxu0 0
          %1548 = vmatprep.subr.bf16.mxu0 0
          %1549 = vmatpush2.bf16.msra.mxu0 0
          %1550 = vmatprep.subr.bf16.mxu0 0
          %1551 = vmatpush2.bf16.msra.mxu0 0
          %1552 = vmatprep.subr.bf16.mxu0 0
          %1553 = vmatpush2.bf16.msra.mxu0 0
          %1554 = vmatprep.subr.bf16.mxu0 0
          %1555 = vmatpush2.bf16.msra.mxu0 0
          %1556 = vmatprep.subr.bf16.mxu0 0
          %1557 = vmatpush2.bf16.msra.mxu0 0
          %1558 = vmatprep.subr.bf16.mxu0 0
          %1559 = vmatpush2.bf16.msra.mxu0 0
          %1560 = vmatprep.mubr.bf16.mxu0 0
          %1561 = vmatmul.mubr.bf16.gmra.mxu0 %v1456
          %v1562 = vpop.f32.mrf.mxu0
          %v1563 = vadd.f32 0.0, %v1562
          %v1564 = vpop.f32.mrf.mxu0
          %v1565 = vpop.f32.mrf.mxu0
          %v1566 = vadd.f32 0.0, %v1565
          %v1567 = vpop.f32.mrf.mxu0
          %1568 = vmatprep.mubr.bf16.mxu0 0
          %1569 = vmatmul.mubr.bf16.gmra.mxu0 %v1457
          %v1570 = vpop.f32.mrf.mxu0
          %v1571 = vadd.f32 0.0, %v1570
          %v1572 = vpop.f32.mrf.mxu0
          %v1573 = vpop.f32.mrf.mxu0
          %v1574 = vadd.f32 0.0, %v1573
          %v1575 = vpop.f32.mrf.mxu0
          %1576 = vmatprep.mubr.bf16.mxu0 0
          %1577 = vmatmul.mubr.bf16.gmra.mxu0 %v1458
          %v1578 = vpop.f32.mrf.mxu0
          %v1579 = vadd.f32 0.0, %v1578
          %v1580 = vpop.f32.mrf.mxu0
          %v1581 = vpop.f32.mrf.mxu0
          %v1582 = vadd.f32 0.0, %v1581
          %v1583 = vpop.f32.mrf.mxu0
          %1584 = vmatprep.mubr.bf16.mxu0 0
          %1585 = vmatmul.mubr.bf16.gmra.mxu0 %v1459
          %v1586 = vpop.f32.mrf.mxu0
          %v1587 = vadd.f32 0.0, %v1586
          %v1588 = vpop.f32.mrf.mxu0
          %v1589 = vpop.f32.mrf.mxu0
          %v1590 = vadd.f32 0.0, %v1589
          %v1591 = vpop.f32.mrf.mxu0
          %1592 = vmatprep.mubr.bf16.mxu0 0
          %1593 = vmatmul.mubr.bf16.gmra.mxu0 %v1460
          %v1594 = vpop.f32.mrf.mxu0
          %v1595 = vadd.f32 0.0, %v1594
          %v1596 = vpop.f32.mrf.mxu0
          %v1597 = vpop.f32.mrf.mxu0
          %v1598 = vadd.f32 0.0, %v1597
          %v1599 = vpop.f32.mrf.mxu0
          %1600 = vmatprep.mubr.bf16.mxu0 0
          %1601 = vmatmul.mubr.bf16.gmra.mxu0 %v1461
          %v1602 = vpop.f32.mrf.mxu0
          %v1603 = vadd.f32 0.0, %v1602
          %v1604 = vpop.f32.mrf.mxu0
          %v1605 = vpop.f32.mrf.mxu0
          %v1606 = vadd.f32 0.0, %v1605
          %v1607 = vpop.f32.mrf.mxu0
          %1608 = vmatprep.mubr.bf16.mxu0 0
          %1609 = vmatmul.mubr.bf16.gmra.mxu0 %v1462
          %v1610 = vpop.f32.mrf.mxu0
          %v1611 = vadd.f32 0.0, %v1610
          %v1612 = vpop.f32.mrf.mxu0
          %v1613 = vpop.f32.mrf.mxu0
          %v1614 = vadd.f32 0.0, %v1613
          %v1615 = vpop.f32.mrf.mxu0
          %1616 = vmatprep.mubr.bf16.mxu0 0
          %1617 = vmatmul.mubr.bf16.gmra.mxu0 %v1463
          %v1618 = vpop.f32.mrf.mxu0
          %v1619 = vadd.f32 0.0, %v1618
          %v1620 = vpop.f32.mrf.mxu0
          %v1621 = vpop.f32.mrf.mxu0
          %v1622 = vadd.f32 0.0, %v1621
          %v1623 = vpop.f32.mrf.mxu0
          %1624 = vdwg.mxu0
          %v1625 = vpack.c.bf16 %v1566, %v1563
          %v1626 = vpack.c.bf16 %v1574, %v1571
          %v1627 = vpack.c.bf16 %v1582, %v1579
          %v1628 = vpack.c.bf16 %v1590, %v1587
          %v1629 = vpack.c.bf16 %v1598, %v1595
          %v1630 = vpack.c.bf16 %v1606, %v1603
          %v1631 = vpack.c.bf16 %v1614, %v1611
          %v1632 = vpack.c.bf16 %v1622, %v1619
          %v1641 = vunpack.c.l.b16 %v1625
          %v1642 = vunpack.c.h.b16 %v1625
          %v1643 = vunpack.c.l.b16 %v1626
          %v1644 = vunpack.c.h.b16 %v1626
          %v1645 = vunpack.c.l.b16 %v1627
          %v1646 = vunpack.c.h.b16 %v1627
          %v1647 = vunpack.c.l.b16 %v1628
          %v1648 = vunpack.c.h.b16 %v1628
          %v1649 = vunpack.c.l.b16 %v1629
          %v1650 = vunpack.c.h.b16 %v1629
          %v1651 = vunpack.c.l.b16 %v1630
          %v1652 = vunpack.c.h.b16 %v1630
          %v1653 = vunpack.c.l.b16 %v1631
          %v1654 = vunpack.c.h.b16 %v1631
          %v1655 = vunpack.c.l.b16 %v1632
          %v1656 = vunpack.c.h.b16 %v1632
          %v1657 = vpack.c.b16 %v1641, %v1641
          %v1658 = vpack.c.b16 %v1642, %v1642
          %v1659 = vpack.c.b16 %v1643, %v1643
          %v1660 = vpack.c.b16 %v1644, %v1644
          %v1661 = vpack.c.b16 %v1645, %v1645
          %v1662 = vpack.c.b16 %v1646, %v1646
          %v1663 = vpack.c.b16 %v1647, %v1647
          %v1664 = vpack.c.b16 %v1648, %v1648
          %v1665 = vpack.c.b16 %v1649, %v1649
          %v1666 = vpack.c.b16 %v1650, %v1650
          %v1667 = vpack.c.b16 %v1651, %v1651
          %v1668 = vpack.c.b16 %v1652, %v1652
          %v1669 = vpack.c.b16 %v1653, %v1653
          %v1670 = vpack.c.b16 %v1654, %v1654
          %v1671 = vpack.c.b16 %v1655, %v1655
          %v1672 = vpack.c.b16 %v1656, %v1656
          %1689 = vst [vmem:[%s539] sm:$0xf] %v1657
          %1690 = vst [vmem:[%s539 + $0x4] sm:$0xf] %v1658
          %1691 = vst [vmem:[%s539 + $0x8] sm:$0xf] %v1659
          %1692 = vst [vmem:[%s539 + $0xc] sm:$0xf] %v1660
          %1693 = vst [vmem:[%s539 + $0x10] sm:$0xf] %v1661
          %1694 = vst [vmem:[%s539 + $0x14] sm:$0xf] %v1662
          %1695 = vst [vmem:[%s539 + $0x18] sm:$0xf] %v1663
          %1696 = vst [vmem:[%s539 + $0x1c] sm:$0xf] %v1664
          %1697 = vst [vmem:[%s539 + $0x20] sm:$0xf] %v1665
          %1698 = vst [vmem:[%s539 + $0x24] sm:$0xf] %v1666
          %1699 = vst [vmem:[%s539 + $0x28] sm:$0xf] %v1667
          %1700 = vst [vmem:[%s539 + $0x2c] sm:$0xf] %v1668
          %1701 = vst [vmem:[%s539 + $0x30] sm:$0xf] %v1669
          %1702 = vst [vmem:[%s539 + $0x34] sm:$0xf] %v1670
          %1703 = vst [vmem:[%s539 + $0x38] sm:$0xf] %v1671
          %1704 = vst [vmem:[%s539 + $0x3c] sm:$0xf] %v1672
          %v1705 = vld [vmem:[#allocation11] sm:$0xf]
          %v1706 = vld [vmem:[#allocation11 + $0x4] sm:$0xf]
          %v1707 = vld [vmem:[#allocation11 + $0x8] sm:$0xf]
          %v1708 = vld [vmem:[#allocation11 + $0xc] sm:$0xf]
          %v1709 = vld [vmem:[#allocation11 + $0x10] sm:$0xf]
          %v1710 = vld [vmem:[#allocation11 + $0x14] sm:$0xf]
          %v1711 = vld [vmem:[#allocation11 + $0x18] sm:$0xf]
          %v1712 = vld [vmem:[#allocation11 + $0x1c] sm:$0xf]
          %v1713 = vld [vmem:[#allocation11 + $0x20] sm:$0xf]
          %v1714 = vld [vmem:[#allocation11 + $0x24] sm:$0xf]
          %v1715 = vld [vmem:[#allocation11 + $0x28] sm:$0xf]
          %v1716 = vld [vmem:[#allocation11 + $0x2c] sm:$0xf]
          %v1717 = vld [vmem:[#allocation11 + $0x30] sm:$0xf]
          %v1718 = vld [vmem:[#allocation11 + $0x34] sm:$0xf]
          %v1719 = vld [vmem:[#allocation11 + $0x38] sm:$0xf]
          %v1720 = vld [vmem:[#allocation11 + $0x3c] sm:$0xf]
          %v1721 = vld [vmem:[%s9] sm:$0x1]
          %v1723 = vlaneseq
          %v1724 = vshrl.u32 %v1723, 7
          %v1725 = vsub.s32 0, %v1724
          %v1726 = vrot.slane %v1721, %v1725
          %v1744 = vunpack.c.l.b16 %v1705
          %v1745 = vunpack.c.l.b16 %v1706
          %v1746 = vunpack.c.l.b16 %v1707
          %v1747 = vunpack.c.l.b16 %v1708
          %v1748 = vunpack.c.l.b16 %v1709
          %v1749 = vunpack.c.l.b16 %v1710
          %v1750 = vunpack.c.l.b16 %v1711
          %v1751 = vunpack.c.l.b16 %v1712
          %v1752 = vunpack.c.l.b16 %v1713
          %v1753 = vunpack.c.l.b16 %v1714
          %v1754 = vunpack.c.l.b16 %v1715
          %v1755 = vunpack.c.l.b16 %v1716
          %v1756 = vunpack.c.l.b16 %v1717
          %v1757 = vunpack.c.l.b16 %v1718
          %v1758 = vunpack.c.l.b16 %v1719
          %v1759 = vunpack.c.l.b16 %v1720
          %v1760 = vpack.c.b16 %v1745, %v1744
          %v1761 = vpack.c.b16 %v1747, %v1746
          %v1762 = vpack.c.b16 %v1749, %v1748
          %v1763 = vpack.c.b16 %v1751, %v1750
          %v1764 = vpack.c.b16 %v1753, %v1752
          %v1765 = vpack.c.b16 %v1755, %v1754
          %v1766 = vpack.c.b16 %v1757, %v1756
          %v1767 = vpack.c.b16 %v1759, %v1758
          %1776 = vmatprep.subr.bf16.mxu0 0
          %1777 = vmatpush1.bf16.msra.mxu0 %v1767
          %1778 = vmatprep.subr.bf16.mxu0 0
          %1779 = vmatpush1.bf16.msra.mxu0 %v1766
          %1780 = vmatprep.subr.bf16.mxu0 0
          %1781 = vmatpush1.bf16.msra.mxu0 %v1765
          %1782 = vmatprep.subr.bf16.mxu0 0
          %1783 = vmatpush1.bf16.msra.mxu0 %v1764
          %1784 = vmatprep.subr.bf16.mxu0 0
          %1785 = vmatpush1.bf16.msra.mxu0 %v1763
          %1786 = vmatprep.subr.bf16.mxu0 0
          %1787 = vmatpush1.bf16.msra.mxu0 %v1762
          %1788 = vmatprep.subr.bf16.mxu0 0
          %1789 = vmatpush1.bf16.msra.mxu0 %v1761
          %1790 = vmatprep.subr.bf16.mxu0 0
          %1791 = vmatpush1.bf16.msra.mxu0 %v1760
          %1792 = vmatprep.subr.bf16.mxu0 0
          %1793 = vmatpush2.bf16.msra.mxu0 0
          %1794 = vmatprep.subr.bf16.mxu0 0
          %1795 = vmatpush2.bf16.msra.mxu0 0
          %1796 = vmatprep.subr.bf16.mxu0 0
          %1797 = vmatpush2.bf16.msra.mxu0 0
          %1798 = vmatprep.subr.bf16.mxu0 0
          %1799 = vmatpush2.bf16.msra.mxu0 0
          %1800 = vmatprep.subr.bf16.mxu0 0
          %1801 = vmatpush2.bf16.msra.mxu0 0
          %1802 = vmatprep.subr.bf16.mxu0 0
          %1803 = vmatpush2.bf16.msra.mxu0 0
          %1804 = vmatprep.subr.bf16.mxu0 0
          %1805 = vmatpush2.bf16.msra.mxu0 0
          %1806 = vmatprep.subr.bf16.mxu0 0
          %1807 = vmatpush2.bf16.msra.mxu0 0
          %1808 = vmatprep.mubr.bf16.mxu0 0
          %1809 = vmatmul.mubr.bf16.gmra.mxu0 %v1456
          %v1810 = vpop.f32.mrf.mxu0
          %v1811 = vadd.f32 %v1726, %v1810
          %v1812 = vpop.f32.mrf.mxu0
          %v1813 = vpop.f32.mrf.mxu0
          %v1814 = vadd.f32 %v1726, %v1813
          %v1815 = vpop.f32.mrf.mxu0
          %1816 = vmatprep.mubr.bf16.mxu0 0
          %1817 = vmatmul.mubr.bf16.gmra.mxu0 %v1457
          %v1818 = vpop.f32.mrf.mxu0
          %v1819 = vadd.f32 %v1726, %v1818
          %v1820 = vpop.f32.mrf.mxu0
          %v1821 = vpop.f32.mrf.mxu0
          %v1822 = vadd.f32 %v1726, %v1821
          %v1823 = vpop.f32.mrf.mxu0
          %1824 = vmatprep.mubr.bf16.mxu0 0
          %1825 = vmatmul.mubr.bf16.gmra.mxu0 %v1458
          %v1826 = vpop.f32.mrf.mxu0
          %v1827 = vadd.f32 %v1726, %v1826
          %v1828 = vpop.f32.mrf.mxu0
          %v1829 = vpop.f32.mrf.mxu0
          %v1830 = vadd.f32 %v1726, %v1829
          %v1831 = vpop.f32.mrf.mxu0
          %1832 = vmatprep.mubr.bf16.mxu0 0
          %1833 = vmatmul.mubr.bf16.gmra.mxu0 %v1459
          %v1834 = vpop.f32.mrf.mxu0
          %v1835 = vadd.f32 %v1726, %v1834
          %v1836 = vpop.f32.mrf.mxu0
          %v1837 = vpop.f32.mrf.mxu0
          %v1838 = vadd.f32 %v1726, %v1837
          %v1839 = vpop.f32.mrf.mxu0
          %1840 = vmatprep.mubr.bf16.mxu0 0
          %1841 = vmatmul.mubr.bf16.gmra.mxu0 %v1460
          %v1842 = vpop.f32.mrf.mxu0
          %v1843 = vadd.f32 %v1726, %v1842
          %v1844 = vpop.f32.mrf.mxu0
          %v1845 = vpop.f32.mrf.mxu0
          %v1846 = vadd.f32 %v1726, %v1845
          %v1847 = vpop.f32.mrf.mxu0
          %1848 = vmatprep.mubr.bf16.mxu0 0
          %1849 = vmatmul.mubr.bf16.gmra.mxu0 %v1461
          %v1850 = vpop.f32.mrf.mxu0
          %v1851 = vadd.f32 %v1726, %v1850
          %v1852 = vpop.f32.mrf.mxu0
          %v1853 = vpop.f32.mrf.mxu0
          %v1854 = vadd.f32 %v1726, %v1853
          %v1855 = vpop.f32.mrf.mxu0
          %1856 = vmatprep.mubr.bf16.mxu0 0
          %1857 = vmatmul.mubr.bf16.gmra.mxu0 %v1462
          %v1858 = vpop.f32.mrf.mxu0
          %v1859 = vadd.f32 %v1726, %v1858
          %v1860 = vpop.f32.mrf.mxu0
          %v1861 = vpop.f32.mrf.mxu0
          %v1862 = vadd.f32 %v1726, %v1861
          %v1863 = vpop.f32.mrf.mxu0
          %1864 = vmatprep.mubr.bf16.mxu0 0
          %1865 = vmatmul.mubr.bf16.gmra.mxu0 %v1463
          %v1866 = vpop.f32.mrf.mxu0
          %v1867 = vadd.f32 %v1726, %v1866
          %v1868 = vpop.f32.mrf.mxu0
          %v1869 = vpop.f32.mrf.mxu0
          %v1870 = vadd.f32 %v1726, %v1869
          %v1871 = vpop.f32.mrf.mxu0
          %1872 = vdwg.mxu0
          %1873 = vst [vmem:[%s546] sm:$0xff] %v1811
          %1874 = vst [vmem:[%s546 + $0x8] sm:$0xff] %v1814
          %1875 = vst [vmem:[%s546 + $0x10] sm:$0xff] %v1819
          %1876 = vst [vmem:[%s546 + $0x18] sm:$0xff] %v1822
          %1877 = vst [vmem:[%s546 + $0x20] sm:$0xff] %v1827
          %1878 = vst [vmem:[%s546 + $0x28] sm:$0xff] %v1830
          %1879 = vst [vmem:[%s546 + $0x30] sm:$0xff] %v1835
          %1880 = vst [vmem:[%s546 + $0x38] sm:$0xff] %v1838
          %1881 = vst [vmem:[%s546 + $0x40] sm:$0xff] %v1843
          %1882 = vst [vmem:[%s546 + $0x48] sm:$0xff] %v1846
          %1883 = vst [vmem:[%s546 + $0x50] sm:$0xff] %v1851
          %1884 = vst [vmem:[%s546 + $0x58] sm:$0xff] %v1854
          %1885 = vst [vmem:[%s546 + $0x60] sm:$0xff] %v1859
          %1886 = vst [vmem:[%s546 + $0x68] sm:$0xff] %v1862
          %1887 = vst [vmem:[%s546 + $0x70] sm:$0xff] %v1867
          %1888 = vst [vmem:[%s546 + $0x78] sm:$0xff] %v1870
        $region88: #{tpu_custom_call.1} parent=59 // pred_fallthru
          _
        %s1889 = sand.u32 %s286, 1
        %s1890 = scalar_lea.sflag [#allocation5], %s1889
        %s1891 = sand.u32 %s286, 1
        %s1892 = smul.addr %s1891, 64
        %s1893 = scalar_lea.vmem [#allocation12], %s1892
        %s1894 = sand.u32 %s312, 1
        %s1895 = scalar_lea.sflag [#allocation14], %s1894
        %s1896 = sand.u32 %s312, 1
        %s1897 = smul.addr %s1896, 128
        %s1898 = scalar_lea.vmem [#allocation13], %s1897
        // Predicated region
        $region89: #{tpu_custom_call.1} parent=59 // pred_check
          %p1899 = pneg %p296
        $region90: #{tpu_custom_call.1} parent=59 // pred_check_branch
          %1901 = sbr.rel (%p1899) target = $region92
        $region91: #{tpu_custom_call.1} parent=59 // pred_region
          %s1902 = smul.u32 16, %s38
          %s1904 = ssub.s32 1024, 1024
          %1905 = vsyncadd %s1890, %s1904
          %s1906 = smul.addr %s1902, 64
          %s1907 = scalar_lea.hbm %s10, %s1906
          %s1908 = sshll.u32 %s1893, 4
          %s1909 = int_to_ptr.vmem [resolvable:$true] %s1908
          %1914 = dma.vmem_to_hbm [thread:$0]  %s1909, 1024, %s1907, %s1890, 64, 64, 4
        $region92: #{tpu_custom_call.1} parent=59 // pred_fallthru
          _
        // Predicated region
        $region93: #{tpu_custom_call.1} parent=59 // pred_check
          %p1915 = pneg %p322
        $region94: #{tpu_custom_call.1} parent=59 // pred_check_branch
          %1917 = sbr.rel (%p1915) target = $region96
        $region95: #{tpu_custom_call.1} parent=59 // pred_region
          %s1918 = smul.u32 16, %s38
          %s1920 = ssub.s32 2048, 2048
          %1921 = vsyncadd %s1895, %s1920
          %s1922 = smul.addr %s1918, 128
          %s1923 = scalar_lea.hbm %s11, %s1922
          %s1924 = sshll.u32 %s1898, 4
          %s1925 = int_to_ptr.vmem [resolvable:$true] %s1924
          %1930 = dma.vmem_to_hbm [thread:$0]  %s1925, 2048, %s1923, %s1895, 128, 128, 8
        $region96: #{tpu_custom_call.1} parent=59 // pred_fallthru
          _
      $region60: #{tpu_custom_call.1} parent=5 // pred_fallthru
        _
      %p1931 = scmp.le.s32.totalorder 2, %s29
      // Predicated region
      $region97: #{tpu_custom_call.1} parent=5 // pred_check
        %p1932 = pneg %p1931
      $region98: #{tpu_custom_call.1} parent=5 // pred_check_branch
        %1934 = sbr.rel (%p1932) target = $region100
      $region99: #{tpu_custom_call.1} parent=5 // pred_region
        %s1935 = ssub.s32 %s29, 2
        // Predicated region
        $region101: #{tpu_custom_call.1} parent=99 // pred_check
          %p1936 = pneg %p302
        $region102: #{tpu_custom_call.1} parent=99 // pred_check_branch
          %1938 = sbr.rel (%p1936) target = $region104
        $region103: #{tpu_custom_call.1} parent=99 // pred_region
          %s1939 = sand.u32 %s287, 1
          %s1940 = scalar_lea.sflag [#allocation5], %s1939
          %s1941 = sand.u32 %s287, 1
          %s1942 = smul.addr %s1941, 64
          %s1943 = scalar_lea.vmem [#allocation12], %s1942
          %1944 = dma.done %s1940, 1024
        $region104: #{tpu_custom_call.1} parent=99 // pred_fallthru
          _
        // Predicated region
        $region105: #{tpu_custom_call.1} parent=99 // pred_check
          %p1945 = pneg %p328
        $region106: #{tpu_custom_call.1} parent=99 // pred_check_branch
          %1947 = sbr.rel (%p1945) target = $region108
        $region107: #{tpu_custom_call.1} parent=99 // pred_region
          %s1948 = sand.u32 %s313, 1
          %s1949 = scalar_lea.sflag [#allocation14], %s1948
          %s1950 = sand.u32 %s313, 1
          %s1951 = smul.addr %s1950, 128
          %s1952 = scalar_lea.vmem [#allocation13], %s1951
          %1953 = dma.done %s1949, 2048
        $region108: #{tpu_custom_call.1} parent=99 // pred_fallthru
          _
      $region100: #{tpu_custom_call.1} parent=5 // pred_fallthru
        _
    $region6: #{tpu_custom_call.1} parent=1 // loop_footer
      %s33 = sadd.s32 1, %s29
    $region7: #{tpu_custom_call.1} parent=1 // loop_footer_branch
      %28 = sbr.rel target = $region3
    $region8: #{tpu_custom_call.1} parent=1 // loop_exit
      _
    %1954 = vsyncpa [#allocation4], 1
    %s1955 = scalar_lea.sflag [#allocation4], 1
    %1956 = vsyncpa %s1955, 1
    %1957 = vsyncpa [#allocation7], 1
    %1958 = vsyncpa [#allocation10], 1
    %1959 = vsyncpa [#allocation5], 1
    %s1960 = scalar_lea.sflag [#allocation5], 1
    %1961 = vsyncpa %s1960, 1
    %1962 = vsyncpa [#allocation14], 1
    %s1963 = scalar_lea.sflag [#allocation14], 1
    %1964 = vsyncpa %s1963, 1

</llo_original>
